<compile_context>
chip_gen: v5e
topology: v5e:2x2
jax: 0.10.0
libtpu: 0.0.40
codegen_flags: <defaults>
</compile_context>

<pallas_src>
import numpy as np

import jax
import jax.numpy as jnp
from jax.experimental import pallas as pl
from jax.experimental.pallas import tpu as pltpu

BN_EPS = 1e-5
LEAKY_SLOPE = 0.01  # F.leaky_relu default negative_slope


# ---------------------------------------------------------------------------
# Host-side (concrete) weight preparation.
# ---------------------------------------------------------------------------
def _banded_conv_matrices(w_folded, W):
    """Banded lane-dense conv matrices, one per kh.

    w_folded: (K, K, Cin, Cout) BN-folded conv weight.
    Returns K matrices M_kh of shape (Cin*W, Cout*W) with
      M_kh[cin*W + w_out + kw, cout*W + w_out] = w_folded[kh, kw, cin, cout]
    so that  sum_kh  x[h+kh, :] @ M_kh  is the valid KxK cross-correlation for
    every valid output column w_out (invalid columns carry finite garbage that
    pooling never reads).
    """
    K = w_folded.shape[0]
    Cin, Cout = w_folded.shape[2], w_folded.shape[3]
    mats = []
    for kh in range(K):
        M = np.zeros((Cin * W, Cout * W), np.float32)
        for kw in range(K):
            wo = np.arange(W - kw)
            for cin in range(Cin):
                for cout in range(Cout):
                    M[cin * W + wo + kw, cout * W + wo] = w_folded[kh, kw, cin, cout]
        mats.append(M)
    return mats


def _pool_matrices(Hc, Wc, C, W, window):
    """Per-sample AvgPool2d(window) as row-pool (Hp,Hc) and lane-pool (C*W, C*Wp)."""
    Hp, Wp = Hc // window, Wc // window
    pr = np.zeros((Hp, Hc), np.float32)
    for pi in range(Hp):
        pr[pi, pi * window:(pi + 1) * window] = 1.0 / window
    plm = np.zeros((C * W, C * Wp), np.float32)
    for c in range(C):
        for pj in range(Wp):
            plm[c * W + pj * window:c * W + (pj + 1) * window, c * Wp + pj] = 1.0 / window
    return pr, plm, Hp, Wp


def prepare_kernel_params(params, kernel_size, window, H, W, flattened):
    """BN fold + banded conv matrices + lane biases + pool matrices + flatten perm."""
    K = kernel_size
    inv_std = 1.0 / np.sqrt(1.0 + BN_EPS)   # BN eval: running_mean=0, running_var=1
    n_conv = len(params["conv"])

    kp = {"conv_mats": [], "conv_bias": []}
    for layer in params["conv"]:
        w_raw = np.asarray(layer["w_raw"])                     # (K, K, Cin, Cout)
        scale = np.asarray(layer["gamma"]) * inv_std
        beta = np.asarray(layer["beta"])
        w_f = (w_raw * scale).astype(np.float32)
        b_f = (np.asarray(layer["b_raw"]) * scale + beta).astype(np.float32)
        kp["conv_mats"].append([jnp.asarray(m) for m in _banded_conv_matrices(w_f, W)])
        kp["conv_bias"].append(jnp.asarray(np.repeat(b_f, W)[None, :]))  # lane = c*W + w

    c_last = np.asarray(params["conv"][-1]["w_raw"]).shape[-1]
    Hc = H - n_conv * (K - 1)
    Wc = W - n_conv * (K - 1)
    pr, plm, Hp, Wp = _pool_matrices(Hc, Wc, c_last, W, window)
    assert c_last * Hp * Wp == flattened, (c_last, Hp, Wp, flattened)
    kp["pool_rows"] = jnp.asarray(pr)
    kp["pool_lanes"] = jnp.asarray(plm)

    # torch flatten order (c, pi, pj) vs kernel order (pi, c, pj): fold the
    # permutation into the first weight that consumes the flattened features.
    perm = np.empty(flattened, np.int64)
    for pi in range(Hp):
        for c in range(c_last):
            for pj in range(Wp):
                perm[pi * c_last * Wp + c * Wp + pj] = c * Hp * Wp + pi * Wp + pj

    kp["lin_w"], kp["lin_b"] = [], []
    for i, layer in enumerate(params["linear"]):
        scale = np.asarray(layer["gamma"]) * inv_std
        beta = np.asarray(layer["beta"])
        w_f = (np.asarray(layer["w_raw"]) * scale).astype(np.float32)
        b_f = ((np.asarray(layer["b_raw"]) * scale + beta)[None, :]).astype(np.float32)
        if i == 0:
            w_f = w_f[perm, :]
        kp["lin_w"].append(jnp.asarray(w_f))
        kp["lin_b"].append(jnp.asarray(b_f))

    out_w = np.asarray(params["out_w"], np.float32)
    if not params["linear"]:
        out_w = out_w[perm, :]
    kp["out_w"] = jnp.asarray(out_w)
    kp["out_b"] = jnp.asarray(np.asarray(params["out_b"], np.float32))
    return kp


# ---------------------------------------------------------------------------
# Fused forward: conv stack + avgpool + linear stack + output head, one kernel,
# grid=(N,) parallel over batch.
# ---------------------------------------------------------------------------
def deepsearch_forward(kparams, x_nchw):
    N, C0, H, W = x_nchw.shape
    conv_mats = kparams["conv_mats"]
    conv_bias = kparams["conv_bias"]
    n_conv = len(conv_mats)
    K = len(conv_mats[0])
    lin_w, lin_b = kparams["lin_w"], kparams["lin_b"]
    n_lin = len(lin_w)
    pr_m, pl_m = kparams["pool_rows"], kparams["pool_lanes"]
    Hp = pr_m.shape[0]
    c_last = conv_mats[-1][0].shape[1] // W
    Wp = pl_m.shape[1] // c_last
    flattened = c_last * Hp * Wp
    labels = kparams["out_w"].shape[1]

    # ---- argument list + BlockSpecs -------------------------------------
    args = [x_nchw.astype(jnp.float32)]
    in_specs = [pl.BlockSpec((None, C0, H, W), lambda n: (n, 0, 0, 0))]

    def _add(a):
        args.append(a)
        in_specs.append(pl.BlockSpec(a.shape, lambda n, nd=a.ndim: (0,) * nd))

    for li in range(n_conv):
        for m in conv_mats[li]:
            _add(m)
        _add(conv_bias[li])
    _add(pr_m)
    _add(pl_m)
    for li in range(n_lin):
        _add(lin_w[li])
        _add(lin_b[li])
    _add(kparams["out_w"])
    _add(kparams["out_b"])

    # ---- kernel ----------------------------------------------------------
    def kernel(x_ref, *refs):
        o_ref = refs[-1]
        wrefs = refs[:-1]
        idx = 0
        x_act = None
        rows = H
        for li in range(n_conv):
            mats = [wrefs[idx + kh][...] for kh in range(K)]   # tiny, loaded once
            bias = wrefs[idx + K][...]
            idx += K + 1
            out_rows = rows - (K - 1)
            acc = None
            if li == 0:
                # Native (C0, H, W) input: feed each input channel against the
                # matching row-block of the banded weight -> lane-dense output
                # without any transpose / concat / scratch.
                for cin in range(C0):
                    x_c = x_ref[cin]                           # (H, W)
                    for kh in range(K):
                        term = jnp.dot(x_c[kh:kh + out_rows, :],
                                       mats[kh][cin * W:(cin + 1) * W, :],
                                       preferred_element_type=jnp.float32)
                        acc = term if acc is None else acc + term
            else:
                for kh in range(K):
                    term = jnp.dot(x_act[kh:kh + out_rows, :], mats[kh],
                                   preferred_element_type=jnp.float32)
                    acc = term if acc is None else acc + term
            y = acc + bias                                     # BN(eval) pre-folded
            x_act = jnp.where(y > 0, y, LEAKY_SLOPE * y)
            rows = out_rows

        # AvgPool2d(window): row-pool then lane-pool; both only touch valid
        # rows / lane-blocks, so carried garbage columns never leak.
        pr = wrefs[idx][...]
        plm = wrefs[idx + 1][...]
        idx += 2
        pooled = jnp.dot(pr, x_act, preferred_element_type=jnp.float32)
        pooled = jnp.dot(pooled, plm, preferred_element_type=jnp.float32)
        feat = pooled.reshape(1, flattened)    # flatten perm folded into lin_w[0]

        for li in range(n_lin):
            w = wrefs[idx][...]
            b = wrefs[idx + 1][...]
            idx += 2
            y = jnp.dot(feat, w, preferred_element_type=jnp.float32) + b
            feat = jnp.where(y > 0, y, LEAKY_SLOPE * y)

        ow = wrefs[idx][...]
        ob = wrefs[idx + 1][...]
        o_ref[...] = jnp.dot(feat, ow, preferred_element_type=jnp.float32) + ob

    # ---- cost hint for XLA scheduling around the fused call --------------
    flops = 0
    rows = H
    for li in range(n_conv):
        rows -= K - 1
        ci, co = conv_mats[li][0].shape
        flops += 2 * K * rows * ci * co
    flops += 2 * Hp * rows * pl_m.shape[0] + 2 * Hp * pl_m.shape[0] * pl_m.shape[1]
    for w in lin_w + [kparams["out_w"]]:
        flops += 2 * w.shape[0] * w.shape[1]
    flops *= N
    bytes_accessed = 4 * (int(np.prod(x_nchw.shape))
                          + sum(int(np.prod(a.shape)) for a in args[1:])
                          + N * labels)

    out = pl.pallas_call(
        kernel,
        out_shape=jax.ShapeDtypeStruct((N, 1, labels), jnp.float32),
        grid=(N,),
        in_specs=in_specs,
        out_specs=pl.BlockSpec((None, 1, labels), lambda n: (n, 0, 0)),
        compiler_params=pltpu.CompilerParams(
            dimension_semantics=("parallel",),
            vmem_limit_bytes=32 * 1024 * 1024),
        cost_estimate=pl.CostEstimate(flops=int(flops), transcendentals=0,
                                      bytes_accessed=int(bytes_accessed)),
    )(*args)
    return out.reshape(N, labels)


# ---------------------------------------------------------------------------
# Parameter init (deterministic, synthetic).  Raw params only; BN-fold / banded
# matrices are built by prepare_kernel_params.
# ---------------------------------------------------------------------------
def init_params(key, hidden, kernel_size, hidden_linear, labels):
    K = kernel_size
    params = {"conv": [], "linear": []}
    for i in range(len(hidden) - 1):
        cin, cout = hidden[i], hidden[i + 1]
        key, kw_, kb_, kg_, kbe_ = jax.random.split(key, 5)
        params["conv"].append(dict(
            w_raw=0.1 * jax.random.normal(kw_, (K, K, cin, cout), jnp.float32),  # HWIO
            b_raw=0.1 * jax.random.normal(kb_, (cout,), jnp.float32),
            gamma=1.0 + 0.1 * jax.random.normal(kg_, (cout,), jnp.float32),
            beta=0.1 * jax.random.normal(kbe_, (cout,), jnp.float32)))
    for i in range(len(hidden_linear) - 1):
        fin, fout = hidden_linear[i], hidden_linear[i + 1]
        key, kw_, kb_, kg_, kbe_ = jax.random.split(key, 5)
        bound = float(np.sqrt(6.0 / (fin + fout)))                # xavier_uniform_
        params["linear"].append(dict(
            w_raw=jax.random.uniform(kw_, (fin, fout), jnp.float32, -bound, bound),
            b_raw=0.1 * jax.random.normal(kb_, (fout,), jnp.float32),
            gamma=1.0 + 0.1 * jax.random.normal(kg_, (fout,), jnp.float32),
            beta=0.1 * jax.random.normal(kbe_, (fout,), jnp.float32)))
    fin = hidden_linear[-1]
    key, kw_, kb_ = jax.random.split(key, 3)
    bound = float(np.sqrt(1.0 / fin))
    params["out_w"] = jax.random.uniform(kw_, (fin, labels), jnp.float32, -bound, bound)
    params["out_b"] = jax.random.uniform(kb_, (1, labels), jnp.float32, -bound, bound)
    return params


# ---------------------------------------------------------------------------
# Pure-JAX reference (raw params + explicit BN) — validates the BN fold, the
# banded weight construction, pooling matrices and the flatten permutation.
# ---------------------------------------------------------------------------
def reference_forward(params, x_nchw, kernel_size, window, flattened):
    inv_std = 1.0 / jnp.sqrt(1.0 + BN_EPS)
    x = jnp.transpose(x_nchw, (0, 2, 3, 1)).astype(jnp.float32)
    for layer in params["conv"]:
        y = jax.lax.conv_general_dilated(x, layer["w_raw"], (1, 1), "VALID",
                                         dimension_numbers=("NHWC", "HWIO", "NHWC"))
        y = y + layer["b_raw"]
        y = y * (layer["gamma"] * inv_std) + layer["beta"]
        x = jnp.where(y > 0, y, LEAKY_SLOPE * y)
    N, Hc, Wc, C = x.shape
    Hp, Wp = Hc // window, Wc // window
    x = x[:, :Hp * window, :Wp * window, :].reshape(N, Hp, window, Wp, window, C)
    x = x.mean(axis=(2, 4))                                    # (N, Hp, Wp, C)
    x = jnp.transpose(x, (0, 3, 1, 2)).reshape(-1, flattened)  # torch NCHW .view order
    for layer in params["linear"]:
        y = x @ layer["w_raw"] + layer["b_raw"]
        y = y * (layer["gamma"] * inv_std) + layer["beta"]
        x = jnp.where(y > 0, y, LEAKY_SLOPE * y)
    return x @ params["out_w"] + params["out_b"]


if __name__ == "__main__":
    # DeepSearch(hidden=[4,8,8], kernel_size=3, window=12, hidden_linear=[8,32,16], labels=2)
    # input (2, 4, 16, 16): 16 -> 14 -> 12 after two valid 3x3 convs,
    # AvgPool2d(12) -> 1x1x8 -> flatten 8 -> 32 -> 16 -> 2.
    hidden = [4, 8, 8]
    kernel_size = 3
    window = 12
    hidden_linear = [8, 32, 16]
    labels = 2
    batch, H, W = 2, 16, 16

    key = jax.random.PRNGKey(0)
    key, xkey, pkey = jax.random.split(key, 3)
    x = jax.random.normal(xkey, (batch, hidden[0], H, W), jnp.float32)  # NCHW like PyTorch
    params = init_params(pkey, hidden, kernel_size, hidden_linear, labels)
    kparams = prepare_kernel_params(params, kernel_size, window, H, W, hidden_linear[0])

    fwd = jax.jit(deepsearch_forward)
    out = jax.block_until_ready(fwd(kparams, x))

    ref = reference_forward(params, x, kernel_size, window, hidden_linear[0])
    assert out.shape == (batch, labels), out.shape
    assert jnp.allclose(out, ref, atol=1e-4, rtol=1e-4), (out, ref)
    print("KERNEL_OK")
</pallas_src>

<mosaic_0001>
module attributes {stable_mosaic.version = 11 : i64} {
  func.func @kernel(%arg0: i32, %arg1: memref<1x4x16x16xf32, #tpu.memory_space<vmem>>, %arg2: memref<64x128xf32, #tpu.memory_space<vmem>>, %arg3: memref<64x128xf32, #tpu.memory_space<vmem>>, %arg4: memref<64x128xf32, #tpu.memory_space<vmem>>, %arg5: memref<1x128xf32, #tpu.memory_space<vmem>>, %arg6: memref<128x128xf32, #tpu.memory_space<vmem>>, %arg7: memref<128x128xf32, #tpu.memory_space<vmem>>, %arg8: memref<128x128xf32, #tpu.memory_space<vmem>>, %arg9: memref<1x128xf32, #tpu.memory_space<vmem>>, %arg10: memref<1x12xf32, #tpu.memory_space<vmem>>, %arg11: memref<128x8xf32, #tpu.memory_space<vmem>>, %arg12: memref<8x32xf32, #tpu.memory_space<vmem>>, %arg13: memref<1x32xf32, #tpu.memory_space<vmem>>, %arg14: memref<32x16xf32, #tpu.memory_space<vmem>>, %arg15: memref<1x16xf32, #tpu.memory_space<vmem>>, %arg16: memref<16x2xf32, #tpu.memory_space<vmem>>, %arg17: memref<1x2xf32, #tpu.memory_space<vmem>>, %arg18: memref<1x1x2xf32, #tpu.memory_space<vmem>>) attributes {dimension_semantics = [#tpu.dimension_semantics<parallel>], iteration_bounds = array<i64: 2>, scalar_prefetch = 0 : i64, scratch_operands = 0 : i64, tpu.core_type = #tpu.core_type<tc>, window_params = [{transform_indices = @transform_0, window_bounds = array<i64: 1, 4, 16, 16>}, {pipeline_mode = #tpu.pipeline_mode<synchronous>, transform_indices = @transform_1, window_bounds = array<i64: 64, 128>}, {pipeline_mode = #tpu.pipeline_mode<synchronous>, transform_indices = @transform_2, window_bounds = array<i64: 64, 128>}, {pipeline_mode = #tpu.pipeline_mode<synchronous>, transform_indices = @transform_3, window_bounds = array<i64: 64, 128>}, {pipeline_mode = #tpu.pipeline_mode<synchronous>, transform_indices = @transform_4, window_bounds = array<i64: 1, 128>}, {pipeline_mode = #tpu.pipeline_mode<synchronous>, transform_indices = @transform_5, window_bounds = array<i64: 128, 128>}, {pipeline_mode = #tpu.pipeline_mode<synchronous>, transform_indices = @transform_6, window_bounds = array<i64: 128, 128>}, {pipeline_mode = #tpu.pipeline_mode<synchronous>, transform_indices = @transform_7, window_bounds = array<i64: 128, 128>}, {pipeline_mode = #tpu.pipeline_mode<synchronous>, transform_indices = @transform_8, window_bounds = array<i64: 1, 128>}, {pipeline_mode = #tpu.pipeline_mode<synchronous>, transform_indices = @transform_9, window_bounds = array<i64: 1, 12>}, {pipeline_mode = #tpu.pipeline_mode<synchronous>, transform_indices = @transform_10, window_bounds = array<i64: 128, 8>}, {pipeline_mode = #tpu.pipeline_mode<synchronous>, transform_indices = @transform_11, window_bounds = array<i64: 8, 32>}, {pipeline_mode = #tpu.pipeline_mode<synchronous>, transform_indices = @transform_12, window_bounds = array<i64: 1, 32>}, {pipeline_mode = #tpu.pipeline_mode<synchronous>, transform_indices = @transform_13, window_bounds = array<i64: 32, 16>}, {pipeline_mode = #tpu.pipeline_mode<synchronous>, transform_indices = @transform_14, window_bounds = array<i64: 1, 16>}, {pipeline_mode = #tpu.pipeline_mode<synchronous>, transform_indices = @transform_15, window_bounds = array<i64: 16, 2>}, {pipeline_mode = #tpu.pipeline_mode<synchronous>, transform_indices = @transform_16, window_bounds = array<i64: 1, 2>}, {transform_indices = @transform_17, window_bounds = array<i64: 1, 1, 2>}]} {
    %c0 = arith.constant 0 : index
    %c0_0 = arith.constant 0 : index
    %0 = vector.load %arg2[%c0, %c0_0] : memref<64x128xf32, #tpu.memory_space<vmem>>, vector<64x128xf32>
    %c0_1 = arith.constant 0 : index
    %c0_2 = arith.constant 0 : index
    %1 = vector.load %arg3[%c0_1, %c0_2] : memref<64x128xf32, #tpu.memory_space<vmem>>, vector<64x128xf32>
    %c0_3 = arith.constant 0 : index
    %c0_4 = arith.constant 0 : index
    %2 = vector.load %arg4[%c0_3, %c0_4] : memref<64x128xf32, #tpu.memory_space<vmem>>, vector<64x128xf32>
    %c0_5 = arith.constant 0 : index
    %c0_6 = arith.constant 0 : index
    %3 = vector.load %arg5[%c0_5, %c0_6] : memref<1x128xf32, #tpu.memory_space<vmem>>, vector<1x128xf32>
    %c0_7 = arith.constant 0 : index
    %c0_8 = arith.constant 0 : index
    %c0_9 = arith.constant 0 : index
    %c0_10 = arith.constant 0 : index
    %4 = vector.load %arg1[%c0_7, %c0_8, %c0_9, %c0_10] : memref<1x4x16x16xf32, #tpu.memory_space<vmem>>, vector<1x1x16x16xf32>
    %5 = vector.shape_cast %4 : vector<1x1x16x16xf32> to vector<16x16xf32>
    %6 = vector.extract_strided_slice %5 {offsets = [0, 0], sizes = [14, 16], strides = [1, 1]} : vector<16x16xf32> to vector<14x16xf32>
    %7 = vector.extract_strided_slice %0 {offsets = [0, 0], sizes = [16, 128], strides = [1, 1]} : vector<64x128xf32> to vector<16x128xf32>
    %cst = arith.constant dense<0.000000e+00> : vector<14x128xf32>
    %8 = tpu.matmul %6, %7, %cst {dimension_numbers = #tpu.dot_dimension_numbers<[1], [0], [0], [1], [0, 0, 1, 1], [], []>} : vector<14x16xf32>, vector<16x128xf32>, vector<14x128xf32> -> vector<14x128xf32>
    %9 = vector.extract_strided_slice %5 {offsets = [1, 0], sizes = [14, 16], strides = [1, 1]} : vector<16x16xf32> to vector<14x16xf32>
    %10 = vector.extract_strided_slice %1 {offsets = [0, 0], sizes = [16, 128], strides = [1, 1]} : vector<64x128xf32> to vector<16x128xf32>
    %cst_11 = arith.constant dense<0.000000e+00> : vector<14x128xf32>
    %11 = tpu.matmul %9, %10, %cst_11 {dimension_numbers = #tpu.dot_dimension_numbers<[1], [0], [0], [1], [0, 0, 1, 1], [], []>} : vector<14x16xf32>, vector<16x128xf32>, vector<14x128xf32> -> vector<14x128xf32>
    %12 = arith.addf %8, %11 : vector<14x128xf32>
    %13 = vector.extract_strided_slice %5 {offsets = [2, 0], sizes = [14, 16], strides = [1, 1]} : vector<16x16xf32> to vector<14x16xf32>
    %14 = vector.extract_strided_slice %2 {offsets = [0, 0], sizes = [16, 128], strides = [1, 1]} : vector<64x128xf32> to vector<16x128xf32>
    %cst_12 = arith.constant dense<0.000000e+00> : vector<14x128xf32>
    %15 = tpu.matmul %13, %14, %cst_12 {dimension_numbers = #tpu.dot_dimension_numbers<[1], [0], [0], [1], [0, 0, 1, 1], [], []>} : vector<14x16xf32>, vector<16x128xf32>, vector<14x128xf32> -> vector<14x128xf32>
    %16 = arith.addf %12, %15 : vector<14x128xf32>
    %c0_13 = arith.constant 0 : index
    %c1 = arith.constant 1 : index
    %c0_14 = arith.constant 0 : index
    %c0_15 = arith.constant 0 : index
    %17 = vector.load %arg1[%c0_13, %c1, %c0_14, %c0_15] : memref<1x4x16x16xf32, #tpu.memory_space<vmem>>, vector<1x1x16x16xf32>
    %18 = vector.shape_cast %17 : vector<1x1x16x16xf32> to vector<16x16xf32>
    %19 = vector.extract_strided_slice %18 {offsets = [0, 0], sizes = [14, 16], strides = [1, 1]} : vector<16x16xf32> to vector<14x16xf32>
    %20 = vector.extract_strided_slice %0 {offsets = [16, 0], sizes = [16, 128], strides = [1, 1]} : vector<64x128xf32> to vector<16x128xf32>
    %cst_16 = arith.constant dense<0.000000e+00> : vector<14x128xf32>
    %21 = tpu.matmul %19, %20, %cst_16 {dimension_numbers = #tpu.dot_dimension_numbers<[1], [0], [0], [1], [0, 0, 1, 1], [], []>} : vector<14x16xf32>, vector<16x128xf32>, vector<14x128xf32> -> vector<14x128xf32>
    %22 = arith.addf %16, %21 : vector<14x128xf32>
    %23 = vector.extract_strided_slice %18 {offsets = [1, 0], sizes = [14, 16], strides = [1, 1]} : vector<16x16xf32> to vector<14x16xf32>
    %24 = vector.extract_strided_slice %1 {offsets = [16, 0], sizes = [16, 128], strides = [1, 1]} : vector<64x128xf32> to vector<16x128xf32>
    %cst_17 = arith.constant dense<0.000000e+00> : vector<14x128xf32>
    %25 = tpu.matmul %23, %24, %cst_17 {dimension_numbers = #tpu.dot_dimension_numbers<[1], [0], [0], [1], [0, 0, 1, 1], [], []>} : vector<14x16xf32>, vector<16x128xf32>, vector<14x128xf32> -> vector<14x128xf32>
    %26 = arith.addf %22, %25 : vector<14x128xf32>
    %27 = vector.extract_strided_slice %18 {offsets = [2, 0], sizes = [14, 16], strides = [1, 1]} : vector<16x16xf32> to vector<14x16xf32>
    %28 = vector.extract_strided_slice %2 {offsets = [16, 0], sizes = [16, 128], strides = [1, 1]} : vector<64x128xf32> to vector<16x128xf32>
    %cst_18 = arith.constant dense<0.000000e+00> : vector<14x128xf32>
    %29 = tpu.matmul %27, %28, %cst_18 {dimension_numbers = #tpu.dot_dimension_numbers<[1], [0], [0], [1], [0, 0, 1, 1], [], []>} : vector<14x16xf32>, vector<16x128xf32>, vector<14x128xf32> -> vector<14x128xf32>
    %30 = arith.addf %26, %29 : vector<14x128xf32>
    %c0_19 = arith.constant 0 : index
    %c2 = arith.constant 2 : index
    %c0_20 = arith.constant 0 : index
    %c0_21 = arith.constant 0 : index
    %31 = vector.load %arg1[%c0_19, %c2, %c0_20, %c0_21] : memref<1x4x16x16xf32, #tpu.memory_space<vmem>>, vector<1x1x16x16xf32>
    %32 = vector.shape_cast %31 : vector<1x1x16x16xf32> to vector<16x16xf32>
    %33 = vector.extract_strided_slice %32 {offsets = [0, 0], sizes = [14, 16], strides = [1, 1]} : vector<16x16xf32> to vector<14x16xf32>
    %34 = vector.extract_strided_slice %0 {offsets = [32, 0], sizes = [16, 128], strides = [1, 1]} : vector<64x128xf32> to vector<16x128xf32>
    %cst_22 = arith.constant dense<0.000000e+00> : vector<14x128xf32>
    %35 = tpu.matmul %33, %34, %cst_22 {dimension_numbers = #tpu.dot_dimension_numbers<[1], [0], [0], [1], [0, 0, 1, 1], [], []>} : vector<14x16xf32>, vector<16x128xf32>, vector<14x128xf32> -> vector<14x128xf32>
    %36 = arith.addf %30, %35 : vector<14x128xf32>
    %37 = vector.extract_strided_slice %32 {offsets = [1, 0], sizes = [14, 16], strides = [1, 1]} : vector<16x16xf32> to vector<14x16xf32>
    %38 = vector.extract_strided_slice %1 {offsets = [32, 0], sizes = [16, 128], strides = [1, 1]} : vector<64x128xf32> to vector<16x128xf32>
    %cst_23 = arith.constant dense<0.000000e+00> : vector<14x128xf32>
    %39 = tpu.matmul %37, %38, %cst_23 {dimension_numbers = #tpu.dot_dimension_numbers<[1], [0], [0], [1], [0, 0, 1, 1], [], []>} : vector<14x16xf32>, vector<16x128xf32>, vector<14x128xf32> -> vector<14x128xf32>
    %40 = arith.addf %36, %39 : vector<14x128xf32>
    %41 = vector.extract_strided_slice %32 {offsets = [2, 0], sizes = [14, 16], strides = [1, 1]} : vector<16x16xf32> to vector<14x16xf32>
    %42 = vector.extract_strided_slice %2 {offsets = [32, 0], sizes = [16, 128], strides = [1, 1]} : vector<64x128xf32> to vector<16x128xf32>
    %cst_24 = arith.constant dense<0.000000e+00> : vector<14x128xf32>
    %43 = tpu.matmul %41, %42, %cst_24 {dimension_numbers = #tpu.dot_dimension_numbers<[1], [0], [0], [1], [0, 0, 1, 1], [], []>} : vector<14x16xf32>, vector<16x128xf32>, vector<14x128xf32> -> vector<14x128xf32>
    %44 = arith.addf %40, %43 : vector<14x128xf32>
    %c0_25 = arith.constant 0 : index
    %c3 = arith.constant 3 : index
    %c0_26 = arith.constant 0 : index
    %c0_27 = arith.constant 0 : index
    %45 = vector.load %arg1[%c0_25, %c3, %c0_26, %c0_27] : memref<1x4x16x16xf32, #tpu.memory_space<vmem>>, vector<1x1x16x16xf32>
    %46 = vector.shape_cast %45 : vector<1x1x16x16xf32> to vector<16x16xf32>
    %47 = vector.extract_strided_slice %46 {offsets = [0, 0], sizes = [14, 16], strides = [1, 1]} : vector<16x16xf32> to vector<14x16xf32>
    %48 = vector.extract_strided_slice %0 {offsets = [48, 0], sizes = [16, 128], strides = [1, 1]} : vector<64x128xf32> to vector<16x128xf32>
    %cst_28 = arith.constant dense<0.000000e+00> : vector<14x128xf32>
    %49 = tpu.matmul %47, %48, %cst_28 {dimension_numbers = #tpu.dot_dimension_numbers<[1], [0], [0], [1], [0, 0, 1, 1], [], []>} : vector<14x16xf32>, vector<16x128xf32>, vector<14x128xf32> -> vector<14x128xf32>
    %50 = arith.addf %44, %49 : vector<14x128xf32>
    %51 = vector.extract_strided_slice %46 {offsets = [1, 0], sizes = [14, 16], strides = [1, 1]} : vector<16x16xf32> to vector<14x16xf32>
    %52 = vector.extract_strided_slice %1 {offsets = [48, 0], sizes = [16, 128], strides = [1, 1]} : vector<64x128xf32> to vector<16x128xf32>
    %cst_29 = arith.constant dense<0.000000e+00> : vector<14x128xf32>
    %53 = tpu.matmul %51, %52, %cst_29 {dimension_numbers = #tpu.dot_dimension_numbers<[1], [0], [0], [1], [0, 0, 1, 1], [], []>} : vector<14x16xf32>, vector<16x128xf32>, vector<14x128xf32> -> vector<14x128xf32>
    %54 = arith.addf %50, %53 : vector<14x128xf32>
    %55 = vector.extract_strided_slice %46 {offsets = [2, 0], sizes = [14, 16], strides = [1, 1]} : vector<16x16xf32> to vector<14x16xf32>
    %56 = vector.extract_strided_slice %2 {offsets = [48, 0], sizes = [16, 128], strides = [1, 1]} : vector<64x128xf32> to vector<16x128xf32>
    %cst_30 = arith.constant dense<0.000000e+00> : vector<14x128xf32>
    %57 = tpu.matmul %55, %56, %cst_30 {dimension_numbers = #tpu.dot_dimension_numbers<[1], [0], [0], [1], [0, 0, 1, 1], [], []>} : vector<14x16xf32>, vector<16x128xf32>, vector<14x128xf32> -> vector<14x128xf32>
    %58 = arith.addf %54, %57 : vector<14x128xf32>
    %59 = vector.broadcast %3 : vector<1x128xf32> to vector<14x128xf32>
    %60 = arith.addf %58, %59 : vector<14x128xf32>
    %cst_31 = arith.constant 0.000000e+00 : f32
    %61 = vector.broadcast %cst_31 : f32 to vector<14x128xf32>
    %62 = arith.cmpf ogt, %60, %61 : vector<14x128xf32>
    %cst_32 = arith.constant 0.00999999977 : f32
    %63 = vector.broadcast %cst_32 : f32 to vector<14x128xf32>
    %64 = arith.mulf %63, %60 : vector<14x128xf32>
    %65 = arith.select %62, %60, %64 : vector<14x128xi1>, vector<14x128xf32>
    %c0_33 = arith.constant 0 : index
    %c0_34 = arith.constant 0 : index
    %66 = vector.load %arg6[%c0_33, %c0_34] : memref<128x128xf32, #tpu.memory_space<vmem>>, vector<128x128xf32>
    %c0_35 = arith.constant 0 : index
    %c0_36 = arith.constant 0 : index
    %67 = vector.load %arg7[%c0_35, %c0_36] : memref<128x128xf32, #tpu.memory_space<vmem>>, vector<128x128xf32>
    %c0_37 = arith.constant 0 : index
    %c0_38 = arith.constant 0 : index
    %68 = vector.load %arg8[%c0_37, %c0_38] : memref<128x128xf32, #tpu.memory_space<vmem>>, vector<128x128xf32>
    %c0_39 = arith.constant 0 : index
    %c0_40 = arith.constant 0 : index
    %69 = vector.load %arg9[%c0_39, %c0_40] : memref<1x128xf32, #tpu.memory_space<vmem>>, vector<1x128xf32>
    %70 = vector.extract_strided_slice %65 {offsets = [0, 0], sizes = [12, 128], strides = [1, 1]} : vector<14x128xf32> to vector<12x128xf32>
    %cst_41 = arith.constant dense<0.000000e+00> : vector<12x128xf32>
    %71 = tpu.matmul %70, %66, %cst_41 {dimension_numbers = #tpu.dot_dimension_numbers<[1], [0], [0], [1], [0, 0, 1, 1], [], []>} : vector<12x128xf32>, vector<128x128xf32>, vector<12x128xf32> -> vector<12x128xf32>
    %72 = vector.extract_strided_slice %65 {offsets = [1, 0], sizes = [12, 128], strides = [1, 1]} : vector<14x128xf32> to vector<12x128xf32>
    %cst_42 = arith.constant dense<0.000000e+00> : vector<12x128xf32>
    %73 = tpu.matmul %72, %67, %cst_42 {dimension_numbers = #tpu.dot_dimension_numbers<[1], [0], [0], [1], [0, 0, 1, 1], [], []>} : vector<12x128xf32>, vector<128x128xf32>, vector<12x128xf32> -> vector<12x128xf32>
    %74 = arith.addf %71, %73 : vector<12x128xf32>
    %75 = vector.extract_strided_slice %65 {offsets = [2, 0], sizes = [12, 128], strides = [1, 1]} : vector<14x128xf32> to vector<12x128xf32>
    %cst_43 = arith.constant dense<0.000000e+00> : vector<12x128xf32>
    %76 = tpu.matmul %75, %68, %cst_43 {dimension_numbers = #tpu.dot_dimension_numbers<[1], [0], [0], [1], [0, 0, 1, 1], [], []>} : vector<12x128xf32>, vector<128x128xf32>, vector<12x128xf32> -> vector<12x128xf32>
    %77 = arith.addf %74, %76 : vector<12x128xf32>
    %78 = vector.broadcast %69 : vector<1x128xf32> to vector<12x128xf32>
    %79 = arith.addf %77, %78 : vector<12x128xf32>
    %cst_44 = arith.constant 0.000000e+00 : f32
    %80 = vector.broadcast %cst_44 : f32 to vector<12x128xf32>
    %81 = arith.cmpf ogt, %79, %80 : vector<12x128xf32>
    %cst_45 = arith.constant 0.00999999977 : f32
    %82 = vector.broadcast %cst_45 : f32 to vector<12x128xf32>
    %83 = arith.mulf %82, %79 : vector<12x128xf32>
    %84 = arith.select %81, %79, %83 : vector<12x128xi1>, vector<12x128xf32>
    %c0_46 = arith.constant 0 : index
    %c0_47 = arith.constant 0 : index
    %85 = vector.load %arg10[%c0_46, %c0_47] : memref<1x12xf32, #tpu.memory_space<vmem>>, vector<1x12xf32>
    %c0_48 = arith.constant 0 : index
    %c0_49 = arith.constant 0 : index
    %86 = vector.load %arg11[%c0_48, %c0_49] : memref<128x8xf32, #tpu.memory_space<vmem>>, vector<128x8xf32>
    %cst_50 = arith.constant dense<0.000000e+00> : vector<1x128xf32>
    %87 = tpu.matmul %85, %84, %cst_50 {dimension_numbers = #tpu.dot_dimension_numbers<[1], [0], [0], [1], [0, 0, 1, 1], [], []>} : vector<1x12xf32>, vector<12x128xf32>, vector<1x128xf32> -> vector<1x128xf32>
    %cst_51 = arith.constant dense<0.000000e+00> : vector<1x8xf32>
    %88 = tpu.matmul %87, %86, %cst_51 {dimension_numbers = #tpu.dot_dimension_numbers<[1], [0], [0], [1], [0, 0, 1, 1], [], []>} : vector<1x128xf32>, vector<128x8xf32>, vector<1x8xf32> -> vector<1x8xf32>
    %c0_52 = arith.constant 0 : index
    %c0_53 = arith.constant 0 : index
    %89 = vector.load %arg12[%c0_52, %c0_53] : memref<8x32xf32, #tpu.memory_space<vmem>>, vector<8x32xf32>
    %c0_54 = arith.constant 0 : index
    %c0_55 = arith.constant 0 : index
    %90 = vector.load %arg13[%c0_54, %c0_55] : memref<1x32xf32, #tpu.memory_space<vmem>>, vector<1x32xf32>
    %cst_56 = arith.constant dense<0.000000e+00> : vector<1x32xf32>
    %91 = tpu.matmul %88, %89, %cst_56 {dimension_numbers = #tpu.dot_dimension_numbers<[1], [0], [0], [1], [0, 0, 1, 1], [], []>} : vector<1x8xf32>, vector<8x32xf32>, vector<1x32xf32> -> vector<1x32xf32>
    %92 = arith.addf %91, %90 : vector<1x32xf32>
    %cst_57 = arith.constant 0.000000e+00 : f32
    %93 = vector.broadcast %cst_57 : f32 to vector<1x32xf32>
    %94 = arith.cmpf ogt, %92, %93 : vector<1x32xf32>
    %cst_58 = arith.constant 0.00999999977 : f32
    %95 = vector.broadcast %cst_58 : f32 to vector<1x32xf32>
    %96 = arith.mulf %95, %92 : vector<1x32xf32>
    %97 = arith.select %94, %92, %96 : vector<1x32xi1>, vector<1x32xf32>
    %c0_59 = arith.constant 0 : index
    %c0_60 = arith.constant 0 : index
    %98 = vector.load %arg14[%c0_59, %c0_60] : memref<32x16xf32, #tpu.memory_space<vmem>>, vector<32x16xf32>
    %c0_61 = arith.constant 0 : index
    %c0_62 = arith.constant 0 : index
    %99 = vector.load %arg15[%c0_61, %c0_62] : memref<1x16xf32, #tpu.memory_space<vmem>>, vector<1x16xf32>
    %cst_63 = arith.constant dense<0.000000e+00> : vector<1x16xf32>
    %100 = tpu.matmul %97, %98, %cst_63 {dimension_numbers = #tpu.dot_dimension_numbers<[1], [0], [0], [1], [0, 0, 1, 1], [], []>} : vector<1x32xf32>, vector<32x16xf32>, vector<1x16xf32> -> vector<1x16xf32>
    %101 = arith.addf %100, %99 : vector<1x16xf32>
    %cst_64 = arith.constant 0.000000e+00 : f32
    %102 = vector.broadcast %cst_64 : f32 to vector<1x16xf32>
    %103 = arith.cmpf ogt, %101, %102 : vector<1x16xf32>
    %cst_65 = arith.constant 0.00999999977 : f32
    %104 = vector.broadcast %cst_65 : f32 to vector<1x16xf32>
    %105 = arith.mulf %104, %101 : vector<1x16xf32>
    %106 = arith.select %103, %101, %105 : vector<1x16xi1>, vector<1x16xf32>
    %c0_66 = arith.constant 0 : index
    %c0_67 = arith.constant 0 : index
    %107 = vector.load %arg16[%c0_66, %c0_67] : memref<16x2xf32, #tpu.memory_space<vmem>>, vector<16x2xf32>
    %c0_68 = arith.constant 0 : index
    %c0_69 = arith.constant 0 : index
    %108 = vector.load %arg17[%c0_68, %c0_69] : memref<1x2xf32, #tpu.memory_space<vmem>>, vector<1x2xf32>
    %cst_70 = arith.constant dense<0.000000e+00> : vector<1x2xf32>
    %109 = tpu.matmul %106, %107, %cst_70 {dimension_numbers = #tpu.dot_dimension_numbers<[1], [0], [0], [1], [0, 0, 1, 1], [], []>} : vector<1x16xf32>, vector<16x2xf32>, vector<1x2xf32> -> vector<1x2xf32>
    %110 = arith.addf %109, %108 : vector<1x2xf32>
    %c0_71 = arith.constant 0 : index
    %c0_72 = arith.constant 0 : index
    %c0_73 = arith.constant 0 : index
    %111 = vector.load %arg18[%c0_71, %c0_72, %c0_73] : memref<1x1x2xf32, #tpu.memory_space<vmem>>, vector<1x1x2xf32>
    %112 = vector.shape_cast %111 : vector<1x1x2xf32> to vector<1x2xf32>
    %113 = vector.shape_cast %110 : vector<1x2xf32> to vector<1x1x2xf32>
    tpu.vector_store %arg18[%c0_71, %c0_72, %c0_73], %113 {strides = array<i32>} : memref<1x1x2xf32, #tpu.memory_space<vmem>>, vector<1x1x2xf32>,
    return
  }
  func.func @transform_0(%arg0: i32) -> (i32, i32, i32, i32) {
    %c0_i32 = arith.constant 0 : i32
    %c0_i32_0 = arith.constant 0 : i32
    %c0_i32_1 = arith.constant 0 : i32
    %c0_i32_2 = arith.constant 0 : i32
    return %arg0, %c0_i32, %c0_i32_0, %c0_i32_1 : i32, i32, i32, i32
  }
  func.func @transform_1(%arg0: i32) -> (i32, i32) {
    %c0_i32 = arith.constant 0 : i32
    %c0_i32_0 = arith.constant 0 : i32
    %c0_i32_1 = arith.constant 0 : i32
    return %c0_i32, %c0_i32_0 : i32, i32
  }
  func.func @transform_2(%arg0: i32) -> (i32, i32) {
    %c0_i32 = arith.constant 0 : i32
    %c0_i32_0 = arith.constant 0 : i32
    %c0_i32_1 = arith.constant 0 : i32
    return %c0_i32, %c0_i32_0 : i32, i32
  }
  func.func @transform_3(%arg0: i32) -> (i32, i32) {
    %c0_i32 = arith.constant 0 : i32
    %c0_i32_0 = arith.constant 0 : i32
    %c0_i32_1 = arith.constant 0 : i32
    return %c0_i32, %c0_i32_0 : i32, i32
  }
  func.func @transform_4(%arg0: i32) -> (i32, i32) {
    %c0_i32 = arith.constant 0 : i32
    %c0_i32_0 = arith.constant 0 : i32
    %c0_i32_1 = arith.constant 0 : i32
    return %c0_i32, %c0_i32_0 : i32, i32
  }
  func.func @transform_5(%arg0: i32) -> (i32, i32) {
    %c0_i32 = arith.constant 0 : i32
    %c0_i32_0 = arith.constant 0 : i32
    %c0_i32_1 = arith.constant 0 : i32
    return %c0_i32, %c0_i32_0 : i32, i32
  }
  func.func @transform_6(%arg0: i32) -> (i32, i32) {
    %c0_i32 = arith.constant 0 : i32
    %c0_i32_0 = arith.constant 0 : i32
    %c0_i32_1 = arith.constant 0 : i32
    return %c0_i32, %c0_i32_0 : i32, i32
  }
  func.func @transform_7(%arg0: i32) -> (i32, i32) {
    %c0_i32 = arith.constant 0 : i32
    %c0_i32_0 = arith.constant 0 : i32
    %c0_i32_1 = arith.constant 0 : i32
    return %c0_i32, %c0_i32_0 : i32, i32
  }
  func.func @transform_8(%arg0: i32) -> (i32, i32) {
    %c0_i32 = arith.constant 0 : i32
    %c0_i32_0 = arith.constant 0 : i32
    %c0_i32_1 = arith.constant 0 : i32
    return %c0_i32, %c0_i32_0 : i32, i32
  }
  func.func @transform_9(%arg0: i32) -> (i32, i32) {
    %c0_i32 = arith.constant 0 : i32
    %c0_i32_0 = arith.constant 0 : i32
    %c0_i32_1 = arith.constant 0 : i32
    return %c0_i32, %c0_i32_0 : i32, i32
  }
  func.func @transform_10(%arg0: i32) -> (i32, i32) {
    %c0_i32 = arith.constant 0 : i32
    %c0_i32_0 = arith.constant 0 : i32
    %c0_i32_1 = arith.constant 0 : i32
    return %c0_i32, %c0_i32_0 : i32, i32
  }
  func.func @transform_11(%arg0: i32) -> (i32, i32) {
    %c0_i32 = arith.constant 0 : i32
    %c0_i32_0 = arith.constant 0 : i32
    %c0_i32_1 = arith.constant 0 : i32
    return %c0_i32, %c0_i32_0 : i32, i32
  }
  func.func @transform_12(%arg0: i32) -> (i32, i32) {
    %c0_i32 = arith.constant 0 : i32
    %c0_i32_0 = arith.constant 0 : i32
    %c0_i32_1 = arith.constant 0 : i32
    return %c0_i32, %c0_i32_0 : i32, i32
  }
  func.func @transform_13(%arg0: i32) -> (i32, i32) {
    %c0_i32 = arith.constant 0 : i32
    %c0_i32_0 = arith.constant 0 : i32
    %c0_i32_1 = arith.constant 0 : i32
    return %c0_i32, %c0_i32_0 : i32, i32
  }
  func.func @transform_14(%arg0: i32) -> (i32, i32) {
    %c0_i32 = arith.constant 0 : i32
    %c0_i32_0 = arith.constant 0 : i32
    %c0_i32_1 = arith.constant 0 : i32
    return %c0_i32, %c0_i32_0 : i32, i32
  }
  func.func @transform_15(%arg0: i32) -> (i32, i32) {
    %c0_i32 = arith.constant 0 : i32
    %c0_i32_0 = arith.constant 0 : i32
    %c0_i32_1 = arith.constant 0 : i32
    return %c0_i32, %c0_i32_0 : i32, i32
  }
  func.func @transform_16(%arg0: i32) -> (i32, i32) {
    %c0_i32 = arith.constant 0 : i32
    %c0_i32_0 = arith.constant 0 : i32
    %c0_i32_1 = arith.constant 0 : i32
    return %c0_i32, %c0_i32_0 : i32, i32
  }
  func.func @transform_17(%arg0: i32) -> (i32, i32, i32) {
    %c0_i32 = arith.constant 0 : i32
    %c0_i32_0 = arith.constant 0 : i32
    %c0_i32_1 = arith.constant 0 : i32
    return %arg0, %c0_i32, %c0_i32_0 : i32, i32, i32
  }
}

</mosaic_0001>

<llo_original>
// kernel: deepsearch_forward.1
$region0: #{deepsearch_forward.1}
  #allocation0 [shape = 'u32[]', space=smem, size = 0x4, offset = 0x4, fixed_abs, tag = 'smem constant byte address 0x4 - core index']
  #allocation1 [shape = 'u32[72,128]{1,0:T(1,128)}', space=vmem, size = 0x9000, scoped, tag = 'internal scratch']
  %s0 = inlined_call_operand.vmem [shape: f32[2,4,16,16], index: 0, kind: input, shape index: {}]
  %s1 = inlined_call_operand.vmem [shape: f32[64,128], index: 1, kind: input, shape index: {}]
  %s2 = inlined_call_operand.hbm [shape: f32[64,128], index: 2, kind: input, shape index: {}]
  %s3 = inlined_call_operand.hbm [shape: f32[64,128], index: 3, kind: input, shape index: {}]
  %s4 = inlined_call_operand.vmem [shape: f32[1,128], index: 4, kind: input, shape index: {}]
  %s5 = inlined_call_operand.hbm [shape: f32[128,128], index: 5, kind: input, shape index: {}]
  %s6 = inlined_call_operand.hbm [shape: f32[128,128], index: 6, kind: input, shape index: {}]
  %s7 = inlined_call_operand.hbm [shape: f32[128,128], index: 7, kind: input, shape index: {}]
  %s8 = inlined_call_operand.vmem [shape: f32[1,128], index: 8, kind: input, shape index: {}]
  %s9 = inlined_call_operand.vmem [shape: f32[1,12], index: 9, kind: input, shape index: {}]
  %s10 = inlined_call_operand.vmem [shape: f32[128,8], index: 10, kind: input, shape index: {}]
  %s11 = inlined_call_operand.vmem [shape: f32[8,32], index: 11, kind: input, shape index: {}]
  %s12 = inlined_call_operand.vmem [shape: f32[1,32], index: 12, kind: input, shape index: {}]
  %s13 = inlined_call_operand.vmem [shape: f32[32,16], index: 13, kind: input, shape index: {}]
  %s14 = inlined_call_operand.vmem [shape: f32[1,16], index: 14, kind: input, shape index: {}]
  %s15 = inlined_call_operand.vmem [shape: f32[16,2], index: 15, kind: input, shape index: {}]
  %s16 = inlined_call_operand.vmem [shape: f32[1,2], index: 16, kind: input, shape index: {}]
  %s17 = inlined_call_operand.hbm [shape: f32[2,1,2], index: 17, kind: output, shape index: {}]
  %s18 = sld [smem:[#allocation0]]
  $region121: #{deepsearch_forward.1} parent=0
    _
  %s20 = ssub.s32 1, %s18
  %s21 = scalar_select 0, %s20, %s18
  $region1: #{deepsearch_forward.1} parent=0
    #allocation2 [shape = 'u8[32768]{0}', space=vmem, size = 0x8000, scoped, tag = 'input window, operand 2, single buffered']
    #allocation3 [shape = 's32[2]{0}', space=sflag, size = 0x8, scoped, tag = 'scoped memory for deepsearch_forward.1']
    #allocation4 [shape = 's32[2]{0}', space=sflag, size = 0x8, scoped, tag = 'scoped memory for deepsearch_forward.1']
    #allocation5 [shape = 'u8[32768]{0}', space=vmem, size = 0x8000, scoped, tag = 'input window, operand 3, single buffered']
    #allocation6 [shape = 's32[1]{0}', space=sflag, size = 0x4, scoped, tag = 'scoped memory for deepsearch_forward.1']
    #allocation7 [shape = 'u8[65536]{0}', space=vmem, size = 0x10000, scoped, tag = 'input window, operand 5, single buffered']
    #allocation8 [shape = 'u8[65536]{0}', space=vmem, size = 0x10000, scoped, tag = 'input window, operand 6, single buffered']
    #allocation9 [shape = 's32[1]{0}', space=sflag, size = 0x4, scoped, tag = 'scoped memory for deepsearch_forward.1']
    #allocation10 [shape = 'u8[65536]{0}', space=vmem, size = 0x10000, scoped, tag = 'input window, operand 7, single buffered']
    #allocation11 [shape = 'u8[1024]{0}', space=vmem, size = 0x400, scoped, tag = 'output window, operand 0']
    %22 = vsyncpa [#allocation3], 0
    %23 = vsyncpa [#allocation6], 0
    %24 = vsyncpa [#allocation9], 0
    %25 = vsyncpa [#allocation4], 0
    %s26 = scalar_lea.sflag [#allocation4], 1
    %27 = vsyncpa %s26, 0
    loop: start=0, step=1, limit=4
    $region2: #{deepsearch_forward.1} parent=1 // loop_pre_header
      _
    $region3: #{deepsearch_forward.1} parent=1 // loop_header
      %s29 = sphi 0, %s33
      %p30 = scmp.ge.s32.totalorder %s29, 4
      %s39 = sphi 0, %s41
      %s42 = sphi 0, %s39
      %s43 = sphi 0, %s42
      %s59 = sphi 0, %s43
      %s63 = sphi 0, %s63
      %s65 = sphi 0, %s63
      %s66 = sphi 0, %s65
      %s80 = sphi 0, %s66
      %s84 = sphi 0, %s84
      %s86 = sphi 0, %s84
      %s87 = sphi 0, %s86
      %s101 = sphi 0, %s87
      %s105 = sphi 0, %s105
      %s107 = sphi 0, %s105
      %s108 = sphi 0, %s107
      %s122 = sphi 0, %s108
      %s126 = sphi 0, %s126
      %s128 = sphi 0, %s126
      %s129 = sphi 0, %s128
      %s143 = sphi 0, %s129
      %s147 = sphi 0, %s147
      %s149 = sphi 0, %s147
      %s150 = sphi 0, %s149
      %s164 = sphi 0, %s150
      %s168 = sphi 0, %s168
      %s170 = sphi 0, %s168
      %s171 = sphi 0, %s170
      %s185 = sphi 0, %s171
      %s189 = sphi 0, %s189
      %s191 = sphi 0, %s189
      %s192 = sphi 0, %s191
      %s206 = sphi 0, %s192
      %s210 = sphi 0, %s210
      %s212 = sphi 0, %s210
      %s213 = sphi 0, %s212
      %s227 = sphi 0, %s213
      %s231 = sphi 0, %s231
      %s233 = sphi 0, %s231
      %s234 = sphi 0, %s233
      %s248 = sphi 0, %s234
      %s252 = sphi 0, %s252
      %s254 = sphi 0, %s252
      %s255 = sphi 0, %s254
      %s269 = sphi 0, %s255
      %s273 = sphi 0, %s273
      %s275 = sphi 0, %s273
      %s276 = sphi 0, %s275
      %s290 = sphi 0, %s276
      %s294 = sphi 0, %s294
      %s296 = sphi 0, %s294
      %s297 = sphi 0, %s296
      %s311 = sphi 0, %s297
      %s315 = sphi 0, %s315
      %s317 = sphi 0, %s315
      %s318 = sphi 0, %s317
      %s332 = sphi 0, %s318
      %s336 = sphi 0, %s336
      %s338 = sphi 0, %s336
      %s339 = sphi 0, %s338
      %s353 = sphi 0, %s339
      %s357 = sphi 0, %s357
      %s359 = sphi 0, %s357
      %s360 = sphi 0, %s359
      %s374 = sphi 0, %s360
      %s378 = sphi 0, %s378
      %s380 = sphi 0, %s378
      %s381 = sphi 0, %s380
      %s395 = sphi 0, %s381
      %s401 = sphi 0, %s403
      %s404 = sphi 0, %s401
      %s405 = sphi 0, %s404
      %s421 = sphi 0, %s405
    $region4: #{deepsearch_forward.1} parent=1 // loop_header_branch
      %32 = sbr.rel (%p30) target = $region8
    $region5: #{deepsearch_forward.1} parent=1 // loop_body
      %s34 = ssub.s32 %s29, 1
      %s35 = ssub.s32 %s29, 2
      %s36 = sadd.s32 %s29, 1
      %s37 = ssub.s32 %s29, %s36
      %p38 = scmp.eq.s32.totalorder %s37, 0
      %s40 = sadd.s32 %s39, 1
      %s41 = scalar_select %p38, %s39, %s40
      %p44 = pneg %p38
      %p45 = scmp.eq.s32.totalorder %s29, 1
      %p46 = por %p44, %p45
      %p47 = scmp.ne.s32.totalorder %s39, %s42
      %p48 = scmp.eq.s32.totalorder %s29, 0
      %p49 = por %p47, %p48
      %p50 = scmp.ne.s32.totalorder %s39, %s42
      %p51 = scmp.eq.s32.totalorder %s34, 1
      %p52 = por %p50, %p51
      %p53 = scmp.ne.s32.totalorder %s42, %s43
      %p54 = scmp.eq.s32.totalorder %s34, 0
      %p55 = por %p53, %p54
      %p56 = scmp.ne.s32.totalorder %s42, %s43
      %p57 = scmp.eq.s32.totalorder %s35, 1
      %p58 = por %p56, %p57
      %p60 = scmp.ne.s32.totalorder %s43, %s59
      %p61 = scmp.eq.s32.totalorder %s35, 0
      %p62 = por %p60, %p61
      %s64 = sadd.s32 %s63, 1
      %p67 = scmp.eq.s32.totalorder %s29, 1
      %p68 = scmp.ne.s32.totalorder %s63, %s65
      %p69 = scmp.eq.s32.totalorder %s29, 0
      %p70 = por %p68, %p69
      %p71 = scmp.ne.s32.totalorder %s63, %s65
      %p72 = scmp.eq.s32.totalorder %s34, 1
      %p73 = por %p71, %p72
      %p74 = scmp.ne.s32.totalorder %s65, %s66
      %p75 = scmp.eq.s32.totalorder %s34, 0
      %p76 = por %p74, %p75
      %p77 = scmp.ne.s32.totalorder %s65, %s66
      %p78 = scmp.eq.s32.totalorder %s35, 1
      %p79 = por %p77, %p78
      %p81 = scmp.ne.s32.totalorder %s66, %s80
      %p82 = scmp.eq.s32.totalorder %s35, 0
      %p83 = por %p81, %p82
      %s85 = sadd.s32 %s84, 1
      %p88 = scmp.eq.s32.totalorder %s29, 1
      %p89 = scmp.ne.s32.totalorder %s84, %s86
      %p90 = scmp.eq.s32.totalorder %s29, 0
      %p91 = por %p89, %p90
      %p92 = scmp.ne.s32.totalorder %s84, %s86
      %p93 = scmp.eq.s32.totalorder %s34, 1
      %p94 = por %p92, %p93
      %p95 = scmp.ne.s32.totalorder %s86, %s87
      %p96 = scmp.eq.s32.totalorder %s34, 0
      %p97 = por %p95, %p96
      %p98 = scmp.ne.s32.totalorder %s86, %s87
      %p99 = scmp.eq.s32.totalorder %s35, 1
      %p100 = por %p98, %p99
      %p102 = scmp.ne.s32.totalorder %s87, %s101
      %p103 = scmp.eq.s32.totalorder %s35, 0
      %p104 = por %p102, %p103
      %s106 = sadd.s32 %s105, 1
      %p109 = scmp.eq.s32.totalorder %s29, 1
      %p110 = scmp.ne.s32.totalorder %s105, %s107
      %p111 = scmp.eq.s32.totalorder %s29, 0
      %p112 = por %p110, %p111
      %p113 = scmp.ne.s32.totalorder %s105, %s107
      %p114 = scmp.eq.s32.totalorder %s34, 1
      %p115 = por %p113, %p114
      %p116 = scmp.ne.s32.totalorder %s107, %s108
      %p117 = scmp.eq.s32.totalorder %s34, 0
      %p118 = por %p116, %p117
      %p119 = scmp.ne.s32.totalorder %s107, %s108
      %p120 = scmp.eq.s32.totalorder %s35, 1
      %p121 = por %p119, %p120
      %p123 = scmp.ne.s32.totalorder %s108, %s122
      %p124 = scmp.eq.s32.totalorder %s35, 0
      %p125 = por %p123, %p124
      %s127 = sadd.s32 %s126, 1
      %p130 = scmp.eq.s32.totalorder %s29, 1
      %p131 = scmp.ne.s32.totalorder %s126, %s128
      %p132 = scmp.eq.s32.totalorder %s29, 0
      %p133 = por %p131, %p132
      %p134 = scmp.ne.s32.totalorder %s126, %s128
      %p135 = scmp.eq.s32.totalorder %s34, 1
      %p136 = por %p134, %p135
      %p137 = scmp.ne.s32.totalorder %s128, %s129
      %p138 = scmp.eq.s32.totalorder %s34, 0
      %p139 = por %p137, %p138
      %p140 = scmp.ne.s32.totalorder %s128, %s129
      %p141 = scmp.eq.s32.totalorder %s35, 1
      %p142 = por %p140, %p141
      %p144 = scmp.ne.s32.totalorder %s129, %s143
      %p145 = scmp.eq.s32.totalorder %s35, 0
      %p146 = por %p144, %p145
      %s148 = sadd.s32 %s147, 1
      %p151 = scmp.eq.s32.totalorder %s29, 1
      %p152 = scmp.ne.s32.totalorder %s147, %s149
      %p153 = scmp.eq.s32.totalorder %s29, 0
      %p154 = por %p152, %p153
      %p155 = scmp.ne.s32.totalorder %s147, %s149
      %p156 = scmp.eq.s32.totalorder %s34, 1
      %p157 = por %p155, %p156
      %p158 = scmp.ne.s32.totalorder %s149, %s150
      %p159 = scmp.eq.s32.totalorder %s34, 0
      %p160 = por %p158, %p159
      %p161 = scmp.ne.s32.totalorder %s149, %s150
      %p162 = scmp.eq.s32.totalorder %s35, 1
      %p163 = por %p161, %p162
      %p165 = scmp.ne.s32.totalorder %s150, %s164
      %p166 = scmp.eq.s32.totalorder %s35, 0
      %p167 = por %p165, %p166
      %s169 = sadd.s32 %s168, 1
      %p172 = scmp.eq.s32.totalorder %s29, 1
      %p173 = scmp.ne.s32.totalorder %s168, %s170
      %p174 = scmp.eq.s32.totalorder %s29, 0
      %p175 = por %p173, %p174
      %p176 = scmp.ne.s32.totalorder %s168, %s170
      %p177 = scmp.eq.s32.totalorder %s34, 1
      %p178 = por %p176, %p177
      %p179 = scmp.ne.s32.totalorder %s170, %s171
      %p180 = scmp.eq.s32.totalorder %s34, 0
      %p181 = por %p179, %p180
      %p182 = scmp.ne.s32.totalorder %s170, %s171
      %p183 = scmp.eq.s32.totalorder %s35, 1
      %p184 = por %p182, %p183
      %p186 = scmp.ne.s32.totalorder %s171, %s185
      %p187 = scmp.eq.s32.totalorder %s35, 0
      %p188 = por %p186, %p187
      %s190 = sadd.s32 %s189, 1
      %p193 = scmp.eq.s32.totalorder %s29, 1
      %p194 = scmp.ne.s32.totalorder %s189, %s191
      %p195 = scmp.eq.s32.totalorder %s29, 0
      %p196 = por %p194, %p195
      %p197 = scmp.ne.s32.totalorder %s189, %s191
      %p198 = scmp.eq.s32.totalorder %s34, 1
      %p199 = por %p197, %p198
      %p200 = scmp.ne.s32.totalorder %s191, %s192
      %p201 = scmp.eq.s32.totalorder %s34, 0
      %p202 = por %p200, %p201
      %p203 = scmp.ne.s32.totalorder %s191, %s192
      %p204 = scmp.eq.s32.totalorder %s35, 1
      %p205 = por %p203, %p204
      %p207 = scmp.ne.s32.totalorder %s192, %s206
      %p208 = scmp.eq.s32.totalorder %s35, 0
      %p209 = por %p207, %p208
      %s211 = sadd.s32 %s210, 1
      %p214 = scmp.eq.s32.totalorder %s29, 1
      %p215 = scmp.ne.s32.totalorder %s210, %s212
      %p216 = scmp.eq.s32.totalorder %s29, 0
      %p217 = por %p215, %p216
      %p218 = scmp.ne.s32.totalorder %s210, %s212
      %p219 = scmp.eq.s32.totalorder %s34, 1
      %p220 = por %p218, %p219
      %p221 = scmp.ne.s32.totalorder %s212, %s213
      %p222 = scmp.eq.s32.totalorder %s34, 0
      %p223 = por %p221, %p222
      %p224 = scmp.ne.s32.totalorder %s212, %s213
      %p225 = scmp.eq.s32.totalorder %s35, 1
      %p226 = por %p224, %p225
      %p228 = scmp.ne.s32.totalorder %s213, %s227
      %p229 = scmp.eq.s32.totalorder %s35, 0
      %p230 = por %p228, %p229
      %s232 = sadd.s32 %s231, 1
      %p235 = scmp.eq.s32.totalorder %s29, 1
      %p236 = scmp.ne.s32.totalorder %s231, %s233
      %p237 = scmp.eq.s32.totalorder %s29, 0
      %p238 = por %p236, %p237
      %p239 = scmp.ne.s32.totalorder %s231, %s233
      %p240 = scmp.eq.s32.totalorder %s34, 1
      %p241 = por %p239, %p240
      %p242 = scmp.ne.s32.totalorder %s233, %s234
      %p243 = scmp.eq.s32.totalorder %s34, 0
      %p244 = por %p242, %p243
      %p245 = scmp.ne.s32.totalorder %s233, %s234
      %p246 = scmp.eq.s32.totalorder %s35, 1
      %p247 = por %p245, %p246
      %p249 = scmp.ne.s32.totalorder %s234, %s248
      %p250 = scmp.eq.s32.totalorder %s35, 0
      %p251 = por %p249, %p250
      %s253 = sadd.s32 %s252, 1
      %p256 = scmp.eq.s32.totalorder %s29, 1
      %p257 = scmp.ne.s32.totalorder %s252, %s254
      %p258 = scmp.eq.s32.totalorder %s29, 0
      %p259 = por %p257, %p258
      %p260 = scmp.ne.s32.totalorder %s252, %s254
      %p261 = scmp.eq.s32.totalorder %s34, 1
      %p262 = por %p260, %p261
      %p263 = scmp.ne.s32.totalorder %s254, %s255
      %p264 = scmp.eq.s32.totalorder %s34, 0
      %p265 = por %p263, %p264
      %p266 = scmp.ne.s32.totalorder %s254, %s255
      %p267 = scmp.eq.s32.totalorder %s35, 1
      %p268 = por %p266, %p267
      %p270 = scmp.ne.s32.totalorder %s255, %s269
      %p271 = scmp.eq.s32.totalorder %s35, 0
      %p272 = por %p270, %p271
      %s274 = sadd.s32 %s273, 1
      %p277 = scmp.eq.s32.totalorder %s29, 1
      %p278 = scmp.ne.s32.totalorder %s273, %s275
      %p279 = scmp.eq.s32.totalorder %s29, 0
      %p280 = por %p278, %p279
      %p281 = scmp.ne.s32.totalorder %s273, %s275
      %p282 = scmp.eq.s32.totalorder %s34, 1
      %p283 = por %p281, %p282
      %p284 = scmp.ne.s32.totalorder %s275, %s276
      %p285 = scmp.eq.s32.totalorder %s34, 0
      %p286 = por %p284, %p285
      %p287 = scmp.ne.s32.totalorder %s275, %s276
      %p288 = scmp.eq.s32.totalorder %s35, 1
      %p289 = por %p287, %p288
      %p291 = scmp.ne.s32.totalorder %s276, %s290
      %p292 = scmp.eq.s32.totalorder %s35, 0
      %p293 = por %p291, %p292
      %s295 = sadd.s32 %s294, 1
      %p298 = scmp.eq.s32.totalorder %s29, 1
      %p299 = scmp.ne.s32.totalorder %s294, %s296
      %p300 = scmp.eq.s32.totalorder %s29, 0
      %p301 = por %p299, %p300
      %p302 = scmp.ne.s32.totalorder %s294, %s296
      %p303 = scmp.eq.s32.totalorder %s34, 1
      %p304 = por %p302, %p303
      %p305 = scmp.ne.s32.totalorder %s296, %s297
      %p306 = scmp.eq.s32.totalorder %s34, 0
      %p307 = por %p305, %p306
      %p308 = scmp.ne.s32.totalorder %s296, %s297
      %p309 = scmp.eq.s32.totalorder %s35, 1
      %p310 = por %p308, %p309
      %p312 = scmp.ne.s32.totalorder %s297, %s311
      %p313 = scmp.eq.s32.totalorder %s35, 0
      %p314 = por %p312, %p313
      %s316 = sadd.s32 %s315, 1
      %p319 = scmp.eq.s32.totalorder %s29, 1
      %p320 = scmp.ne.s32.totalorder %s315, %s317
      %p321 = scmp.eq.s32.totalorder %s29, 0
      %p322 = por %p320, %p321
      %p323 = scmp.ne.s32.totalorder %s315, %s317
      %p324 = scmp.eq.s32.totalorder %s34, 1
      %p325 = por %p323, %p324
      %p326 = scmp.ne.s32.totalorder %s317, %s318
      %p327 = scmp.eq.s32.totalorder %s34, 0
      %p328 = por %p326, %p327
      %p329 = scmp.ne.s32.totalorder %s317, %s318
      %p330 = scmp.eq.s32.totalorder %s35, 1
      %p331 = por %p329, %p330
      %p333 = scmp.ne.s32.totalorder %s318, %s332
      %p334 = scmp.eq.s32.totalorder %s35, 0
      %p335 = por %p333, %p334
      %s337 = sadd.s32 %s336, 1
      %p340 = scmp.eq.s32.totalorder %s29, 1
      %p341 = scmp.ne.s32.totalorder %s336, %s338
      %p342 = scmp.eq.s32.totalorder %s29, 0
      %p343 = por %p341, %p342
      %p344 = scmp.ne.s32.totalorder %s336, %s338
      %p345 = scmp.eq.s32.totalorder %s34, 1
      %p346 = por %p344, %p345
      %p347 = scmp.ne.s32.totalorder %s338, %s339
      %p348 = scmp.eq.s32.totalorder %s34, 0
      %p349 = por %p347, %p348
      %p350 = scmp.ne.s32.totalorder %s338, %s339
      %p351 = scmp.eq.s32.totalorder %s35, 1
      %p352 = por %p350, %p351
      %p354 = scmp.ne.s32.totalorder %s339, %s353
      %p355 = scmp.eq.s32.totalorder %s35, 0
      %p356 = por %p354, %p355
      %s358 = sadd.s32 %s357, 1
      %p361 = scmp.eq.s32.totalorder %s29, 1
      %p362 = scmp.ne.s32.totalorder %s357, %s359
      %p363 = scmp.eq.s32.totalorder %s29, 0
      %p364 = por %p362, %p363
      %p365 = scmp.ne.s32.totalorder %s357, %s359
      %p366 = scmp.eq.s32.totalorder %s34, 1
      %p367 = por %p365, %p366
      %p368 = scmp.ne.s32.totalorder %s359, %s360
      %p369 = scmp.eq.s32.totalorder %s34, 0
      %p370 = por %p368, %p369
      %p371 = scmp.ne.s32.totalorder %s359, %s360
      %p372 = scmp.eq.s32.totalorder %s35, 1
      %p373 = por %p371, %p372
      %p375 = scmp.ne.s32.totalorder %s360, %s374
      %p376 = scmp.eq.s32.totalorder %s35, 0
      %p377 = por %p375, %p376
      %s379 = sadd.s32 %s378, 1
      %p382 = scmp.eq.s32.totalorder %s29, 1
      %p383 = scmp.ne.s32.totalorder %s378, %s380
      %p384 = scmp.eq.s32.totalorder %s29, 0
      %p385 = por %p383, %p384
      %p386 = scmp.ne.s32.totalorder %s378, %s380
      %p387 = scmp.eq.s32.totalorder %s34, 1
      %p388 = por %p386, %p387
      %p389 = scmp.ne.s32.totalorder %s380, %s381
      %p390 = scmp.eq.s32.totalorder %s34, 0
      %p391 = por %p389, %p390
      %p392 = scmp.ne.s32.totalorder %s380, %s381
      %p393 = scmp.eq.s32.totalorder %s35, 1
      %p394 = por %p392, %p393
      %p396 = scmp.ne.s32.totalorder %s381, %s395
      %p397 = scmp.eq.s32.totalorder %s35, 0
      %p398 = por %p396, %p397
      %s399 = ssub.s32 %s29, %s36
      %p400 = scmp.eq.s32.totalorder %s399, 0
      %s402 = sadd.s32 %s401, 1
      %s403 = scalar_select %p400, %s401, %s402
      %p406 = pneg %p400
      %p407 = scmp.eq.s32.totalorder %s29, 1
      %p408 = por %p406, %p407
      %p409 = scmp.ne.s32.totalorder %s401, %s404
      %p410 = scmp.eq.s32.totalorder %s29, 0
      %p411 = por %p409, %p410
      %p412 = scmp.ne.s32.totalorder %s401, %s404
      %p413 = scmp.eq.s32.totalorder %s34, 1
      %p414 = por %p412, %p413
      %p415 = scmp.ne.s32.totalorder %s404, %s405
      %p416 = scmp.eq.s32.totalorder %s34, 0
      %p417 = por %p415, %p416
      %p418 = scmp.ne.s32.totalorder %s404, %s405
      %p419 = scmp.eq.s32.totalorder %s35, 1
      %p420 = por %p418, %p419
      %p422 = scmp.ne.s32.totalorder %s405, %s421
      %p423 = scmp.eq.s32.totalorder %s35, 0
      %p424 = por %p422, %p423
      %p425 = scmp.le.s32.totalorder 1, %s29
      %p426 = scmp.lt.s32.totalorder %s29, 3
      %p427 = pnand %p425, %p426
      %p428 = pneg %p427
      // Predicated region
      $region9: #{deepsearch_forward.1} parent=5 // pred_check
        _
      $region10: #{deepsearch_forward.1} parent=5 // pred_check_branch
        %430 = sbr.rel (%p427) target = $region12
      $region11: #{deepsearch_forward.1} parent=5 // pred_region
        %s431 = ssub.s32 %s29, 1
        // Predicated region
        $region13: #{deepsearch_forward.1} parent=11 // pred_check
          %p432 = pneg %p76
        $region14: #{deepsearch_forward.1} parent=11 // pred_check_branch
          %434 = sbr.rel (%p432) target = $region16
        $region15: #{deepsearch_forward.1} parent=11 // pred_region
          _
        $region16: #{deepsearch_forward.1} parent=11 // pred_fallthru
          _
        // Predicated region
        $region17: #{deepsearch_forward.1} parent=11 // pred_check
          %p435 = pneg %p97
        $region18: #{deepsearch_forward.1} parent=11 // pred_check_branch
          %437 = sbr.rel (%p435) target = $region20
        $region19: #{deepsearch_forward.1} parent=11 // pred_region
          %439 = vsyncadd [#allocation3], 0
          %s440 = sshll.u32 %s2, 4
          %s441 = int_to_ptr.hbm [resolvable:$true] %s440
          %s442 = sshll.u32 [#allocation2], 4
          %s443 = int_to_ptr.vmem [resolvable:$true] %s442
          %448 = dma.hbm_to_vmem [thread:$0]  %s441, 1024, %s443, [#allocation3], 128, 128, 8
        $region20: #{deepsearch_forward.1} parent=11 // pred_fallthru
          _
        // Predicated region
        $region21: #{deepsearch_forward.1} parent=11 // pred_check
          %p449 = pneg %p118
        $region22: #{deepsearch_forward.1} parent=11 // pred_check_branch
          %451 = sbr.rel (%p449) target = $region24
        $region23: #{deepsearch_forward.1} parent=11 // pred_region
          %453 = vsyncadd [#allocation6], 0
          %s454 = sshll.u32 %s3, 4
          %s455 = int_to_ptr.hbm [resolvable:$true] %s454
          %s456 = sshll.u32 [#allocation5], 4
          %s457 = int_to_ptr.vmem [resolvable:$true] %s456
          %462 = dma.hbm_to_vmem [thread:$0]  %s455, 1024, %s457, [#allocation6], 128, 128, 8
        $region24: #{deepsearch_forward.1} parent=11 // pred_fallthru
          _
        // Predicated region
        $region25: #{deepsearch_forward.1} parent=11 // pred_check
          %p463 = pneg %p139
        $region26: #{deepsearch_forward.1} parent=11 // pred_check_branch
          %465 = sbr.rel (%p463) target = $region28
        $region27: #{deepsearch_forward.1} parent=11 // pred_region
          _
        $region28: #{deepsearch_forward.1} parent=11 // pred_fallthru
          _
        // Predicated region
        $region29: #{deepsearch_forward.1} parent=11 // pred_check
          %p466 = pneg %p160
        $region30: #{deepsearch_forward.1} parent=11 // pred_check_branch
          %468 = sbr.rel (%p466) target = $region32
        $region31: #{deepsearch_forward.1} parent=11 // pred_region
          %470 = vsyncadd [#allocation6], 0
          %s471 = sshll.u32 %s5, 4
          %s472 = int_to_ptr.hbm [resolvable:$true] %s471
          %s473 = sshll.u32 [#allocation7], 4
          %s474 = int_to_ptr.vmem [resolvable:$true] %s473
          %479 = dma.hbm_to_vmem [thread:$0]  %s472, 2048, %s474, [#allocation6], 128, 128, 8
        $region32: #{deepsearch_forward.1} parent=11 // pred_fallthru
          _
        // Predicated region
        $region33: #{deepsearch_forward.1} parent=11 // pred_check
          %p480 = pneg %p181
        $region34: #{deepsearch_forward.1} parent=11 // pred_check_branch
          %482 = sbr.rel (%p480) target = $region36
        $region35: #{deepsearch_forward.1} parent=11 // pred_region
          %484 = vsyncadd [#allocation9], 0
          %s485 = sshll.u32 %s6, 4
          %s486 = int_to_ptr.hbm [resolvable:$true] %s485
          %s487 = sshll.u32 [#allocation8], 4
          %s488 = int_to_ptr.vmem [resolvable:$true] %s487
          %493 = dma.hbm_to_vmem [thread:$0]  %s486, 2048, %s488, [#allocation9], 128, 128, 8
        $region36: #{deepsearch_forward.1} parent=11 // pred_fallthru
          _
        // Predicated region
        $region37: #{deepsearch_forward.1} parent=11 // pred_check
          %p494 = pneg %p202
        $region38: #{deepsearch_forward.1} parent=11 // pred_check_branch
          %496 = sbr.rel (%p494) target = $region40
        $region39: #{deepsearch_forward.1} parent=11 // pred_region
          %498 = vsyncadd [#allocation9], 0
          %s499 = sshll.u32 %s7, 4
          %s500 = int_to_ptr.hbm [resolvable:$true] %s499
          %s501 = sshll.u32 [#allocation10], 4
          %s502 = int_to_ptr.vmem [resolvable:$true] %s501
          %507 = dma.hbm_to_vmem [thread:$0]  %s500, 2048, %s502, [#allocation9], 128, 128, 8
        $region40: #{deepsearch_forward.1} parent=11 // pred_fallthru
          _
        // Predicated region
        $region41: #{deepsearch_forward.1} parent=11 // pred_check
          %p508 = pneg %p223
        $region42: #{deepsearch_forward.1} parent=11 // pred_check_branch
          %510 = sbr.rel (%p508) target = $region44
        $region43: #{deepsearch_forward.1} parent=11 // pred_region
          _
        $region44: #{deepsearch_forward.1} parent=11 // pred_fallthru
          _
        // Predicated region
        $region45: #{deepsearch_forward.1} parent=11 // pred_check
          %p511 = pneg %p244
        $region46: #{deepsearch_forward.1} parent=11 // pred_check_branch
          %513 = sbr.rel (%p511) target = $region48
        $region47: #{deepsearch_forward.1} parent=11 // pred_region
          _
        $region48: #{deepsearch_forward.1} parent=11 // pred_fallthru
          _
        // Predicated region
        $region49: #{deepsearch_forward.1} parent=11 // pred_check
          %p514 = pneg %p265
        $region50: #{deepsearch_forward.1} parent=11 // pred_check_branch
          %516 = sbr.rel (%p514) target = $region52
        $region51: #{deepsearch_forward.1} parent=11 // pred_region
          _
        $region52: #{deepsearch_forward.1} parent=11 // pred_fallthru
          _
        // Predicated region
        $region53: #{deepsearch_forward.1} parent=11 // pred_check
          %p517 = pneg %p286
        $region54: #{deepsearch_forward.1} parent=11 // pred_check_branch
          %519 = sbr.rel (%p517) target = $region56
        $region55: #{deepsearch_forward.1} parent=11 // pred_region
          _
        $region56: #{deepsearch_forward.1} parent=11 // pred_fallthru
          _
        // Predicated region
        $region57: #{deepsearch_forward.1} parent=11 // pred_check
          %p520 = pneg %p307
        $region58: #{deepsearch_forward.1} parent=11 // pred_check_branch
          %522 = sbr.rel (%p520) target = $region60
        $region59: #{deepsearch_forward.1} parent=11 // pred_region
          _
        $region60: #{deepsearch_forward.1} parent=11 // pred_fallthru
          _
        // Predicated region
        $region61: #{deepsearch_forward.1} parent=11 // pred_check
          %p523 = pneg %p328
        $region62: #{deepsearch_forward.1} parent=11 // pred_check_branch
          %525 = sbr.rel (%p523) target = $region64
        $region63: #{deepsearch_forward.1} parent=11 // pred_region
          _
        $region64: #{deepsearch_forward.1} parent=11 // pred_fallthru
          _
        // Predicated region
        $region65: #{deepsearch_forward.1} parent=11 // pred_check
          %p526 = pneg %p349
        $region66: #{deepsearch_forward.1} parent=11 // pred_check_branch
          %528 = sbr.rel (%p526) target = $region68
        $region67: #{deepsearch_forward.1} parent=11 // pred_region
          _
        $region68: #{deepsearch_forward.1} parent=11 // pred_fallthru
          _
        // Predicated region
        $region69: #{deepsearch_forward.1} parent=11 // pred_check
          %p529 = pneg %p370
        $region70: #{deepsearch_forward.1} parent=11 // pred_check_branch
          %531 = sbr.rel (%p529) target = $region72
        $region71: #{deepsearch_forward.1} parent=11 // pred_region
          _
        $region72: #{deepsearch_forward.1} parent=11 // pred_fallthru
          _
        // Predicated region
        $region73: #{deepsearch_forward.1} parent=11 // pred_check
          %p532 = pneg %p391
        $region74: #{deepsearch_forward.1} parent=11 // pred_check_branch
          %534 = sbr.rel (%p532) target = $region76
        $region75: #{deepsearch_forward.1} parent=11 // pred_region
          _
        $region76: #{deepsearch_forward.1} parent=11 // pred_fallthru
          _
      $region12: #{deepsearch_forward.1} parent=5 // pred_fallthru
        _
      %p535 = scmp.lt.s32.totalorder %s29, 2
      // Predicated region
      $region77: #{deepsearch_forward.1} parent=5 // pred_check
        %p536 = pneg %p535
      $region78: #{deepsearch_forward.1} parent=5 // pred_check_branch
        %538 = sbr.rel (%p536) target = $region80
      $region79: #{deepsearch_forward.1} parent=5 // pred_region
        // Predicated region
        $region81: #{deepsearch_forward.1} parent=79 // pred_check
          %p539 = pneg %p49
        $region82: #{deepsearch_forward.1} parent=79 // pred_check_branch
          %541 = sbr.rel (%p539) target = $region84
        $region83: #{deepsearch_forward.1} parent=79 // pred_region
          %p542 = scmp.lt.s32.totalorder %s29, 1
          %s543 = scalar_select %p542, %s29, 1
          %s544 = smul.addr %s543, 8
          %s545 = smul.addr %s544, 8
          %s546 = scalar_lea.vmem %s0, %s545
        $region84: #{deepsearch_forward.1} parent=79 // pred_fallthru
          _
      $region80: #{deepsearch_forward.1} parent=5 // pred_fallthru
        _
      %p547 = scmp.le.s32.totalorder 1, %s29
      %p548 = scmp.lt.s32.totalorder %s29, 3
      %p549 = pnand %p547, %p548
      %p550 = pneg %p549
      // Predicated region
      $region85: #{deepsearch_forward.1} parent=5 // pred_check
        _
      $region86: #{deepsearch_forward.1} parent=5 // pred_check_branch
        %552 = sbr.rel (%p549) target = $region88
      $region87: #{deepsearch_forward.1} parent=5 // pred_region
        %s553 = ssub.s32 %s29, 1
        // Predicated region
        $region89: #{deepsearch_forward.1} parent=87 // pred_check
          %p554 = pneg %p97
        $region90: #{deepsearch_forward.1} parent=87 // pred_check_branch
          %556 = sbr.rel (%p554) target = $region92
        $region91: #{deepsearch_forward.1} parent=87 // pred_region
          %558 = dma.done [#allocation3], 1024
        $region92: #{deepsearch_forward.1} parent=87 // pred_fallthru
          _
        // Predicated region
        $region93: #{deepsearch_forward.1} parent=87 // pred_check
          %p559 = pneg %p118
        $region94: #{deepsearch_forward.1} parent=87 // pred_check_branch
          %561 = sbr.rel (%p559) target = $region96
        $region95: #{deepsearch_forward.1} parent=87 // pred_region
          %563 = dma.done [#allocation6], 1024
        $region96: #{deepsearch_forward.1} parent=87 // pred_fallthru
          _
        // Predicated region
        $region97: #{deepsearch_forward.1} parent=87 // pred_check
          %p564 = pneg %p160
        $region98: #{deepsearch_forward.1} parent=87 // pred_check_branch
          %566 = sbr.rel (%p564) target = $region100
        $region99: #{deepsearch_forward.1} parent=87 // pred_region
          %568 = dma.done [#allocation6], 2048
        $region100: #{deepsearch_forward.1} parent=87 // pred_fallthru
          _
        // Predicated region
        $region101: #{deepsearch_forward.1} parent=87 // pred_check
          %p569 = pneg %p181
        $region102: #{deepsearch_forward.1} parent=87 // pred_check_branch
          %571 = sbr.rel (%p569) target = $region104
        $region103: #{deepsearch_forward.1} parent=87 // pred_region
          %573 = dma.done [#allocation9], 2048
        $region104: #{deepsearch_forward.1} parent=87 // pred_fallthru
          _
        // Predicated region
        $region105: #{deepsearch_forward.1} parent=87 // pred_check
          %p574 = pneg %p202
        $region106: #{deepsearch_forward.1} parent=87 // pred_check_branch
          %576 = sbr.rel (%p574) target = $region108
        $region107: #{deepsearch_forward.1} parent=87 // pred_region
          %578 = dma.done [#allocation9], 2048
        $region108: #{deepsearch_forward.1} parent=87 // pred_fallthru
          _
        %p579 = scmp.lt.s32.totalorder %s34, 1
        %s580 = scalar_select %p579, %s34, 1
        %s581 = smul.addr %s580, 8
        %s582 = smul.addr %s581, 8
        %s583 = scalar_lea.vmem %s0, %s582
        %p584 = pneg %p55
        %p585 = pneg %p52
        %p586 = pneg %p76
        %p587 = pneg %p73
        %p588 = pneg %p97
        %p589 = pneg %p94
        %p590 = pneg %p118
        %p591 = pneg %p115
        %p592 = pneg %p139
        %p593 = pneg %p136
        %p594 = pneg %p160
        %p595 = pneg %p157
        %p596 = pneg %p181
        %p597 = pneg %p178
        %p598 = pneg %p202
        %p599 = pneg %p199
        %p600 = pneg %p223
        %p601 = pneg %p220
        %p602 = pneg %p244
        %p603 = pneg %p241
        %p604 = pneg %p265
        %p605 = pneg %p262
        %p606 = pneg %p286
        %p607 = pneg %p283
        %p608 = pneg %p307
        %p609 = pneg %p304
        %p610 = pneg %p328
        %p611 = pneg %p325
        %p612 = pneg %p349
        %p613 = pneg %p346
        %p614 = pneg %p370
        %p615 = pneg %p367
        %p616 = pneg %p391
        %p617 = pneg %p388
        %p618 = pneg %p417
        %p619 = pneg %p414
        %s620 = sand.u32 %s404, 1
        %s621 = scalar_lea.sflag [#allocation4], %s620
        %s622 = sand.u32 %s404, 1
        %s623 = scalar_lea.vmem [#allocation11], %s622
        %p624 = scmp.lt.s32.totalorder %s34, 1
        %s625 = scalar_select %p624, %s34, 1
        %s626 = smul.addr %s625, 8
        %s627 = smul.addr %s626, 8
        %s628 = scalar_lea.vmem %s0, %s627
        %v629 = vld [vmem:[%s1] sm:$0xff]
        %v630 = vld [vmem:[%s1 + $0x8] sm:$0xff]
        %v631 = vld [vmem:[%s1 + $0x10] sm:$0xff]
        %v632 = vld [vmem:[%s1 + $0x18] sm:$0xff]
        %v633 = vld [vmem:[%s1 + $0x20] sm:$0xff]
        %v634 = vld [vmem:[%s1 + $0x28] sm:$0xff]
        %v635 = vld [vmem:[%s1 + $0x30] sm:$0xff]
        %v636 = vld [vmem:[%s1 + $0x38] sm:$0xff]
        %v637 = vld [vmem:[#allocation2] sm:$0xff]
        %v638 = vld [vmem:[#allocation2 + $0x8] sm:$0xff]
        %v639 = vld [vmem:[#allocation2 + $0x10] sm:$0xff]
        %v640 = vld [vmem:[#allocation2 + $0x18] sm:$0xff]
        %v641 = vld [vmem:[#allocation2 + $0x20] sm:$0xff]
        %v642 = vld [vmem:[#allocation2 + $0x28] sm:$0xff]
        %v643 = vld [vmem:[#allocation2 + $0x30] sm:$0xff]
        %v644 = vld [vmem:[#allocation2 + $0x38] sm:$0xff]
        %v645 = vld [vmem:[#allocation5] sm:$0xff]
        %v646 = vld [vmem:[#allocation5 + $0x8] sm:$0xff]
        %v647 = vld [vmem:[#allocation5 + $0x10] sm:$0xff]
        %v648 = vld [vmem:[#allocation5 + $0x18] sm:$0xff]
        %v649 = vld [vmem:[#allocation5 + $0x20] sm:$0xff]
        %v650 = vld [vmem:[#allocation5 + $0x28] sm:$0xff]
        %v651 = vld [vmem:[#allocation5 + $0x30] sm:$0xff]
        %v652 = vld [vmem:[#allocation5 + $0x38] sm:$0xff]
        %v653 = vld [vmem:[%s4] sm:$0x1]
        %v654 = vld [vmem:[%s628] sm:$0xff]
        %v655 = vld [vmem:[%s628 + $0x8] sm:$0xff]
        %vm658 = vcmask 1046528
        %v659 = vrot.slane %v654, 1
        %v660 = vrot.slane %v655, 1
        %v661 = vsel %vm658, %v659, %v660
        %vm662 = vcmask 130048
        %v663 = vsel %vm662, %v661, 0
        %v665 = vsel %vm662, %v660, 0
        %667 = vmatpush.msra.mxu0 0.0
        %668 = vmatpush.msra.mxu0 0.0
        %669 = vmatpush.msra.mxu0 0.0
        %670 = vmatpush.msra.mxu0 0.0
        %671 = vmatpush.msra.mxu0 0.0
        %672 = vmatpush.msra.mxu0 0.0
        %673 = vmatpush.msra.mxu0 0.0
        %674 = vmatpush.msra.mxu0 0.0
        %675 = vmatpush.msra.mxu0 0.0
        %676 = vmatpush.msra.mxu0 0.0
        %677 = vmatpush.msra.mxu0 0.0
        %678 = vmatpush.msra.mxu0 0.0
        %679 = vmatpush.msra.mxu0 0.0
        %680 = vmatpush.msra.mxu0 0.0
        %681 = vmatpush.msra.mxu0 %v638
        %682 = vmatpush.msra.mxu0 %v637
        %683 = vmatmul.f32.gmra.mxu0 %v663
        %v684 = vpop.f32.mrf.mxu0
        %v685 = vadd.f32 0.0, %v684
        %686 = vmatmul.f32.gmra.mxu0 %v665
        %v687 = vpop.f32.mrf.mxu0
        %v688 = vadd.f32 0.0, %v687
        %689 = vdwg.mxu0
        %v690 = vsel %vm662, %v654, 0
        %v692 = vsel %vm662, %v655, 0
        %694 = vmatpush.msra.mxu0 0.0
        %695 = vmatpush.msra.mxu0 0.0
        %696 = vmatpush.msra.mxu0 0.0
        %697 = vmatpush.msra.mxu0 0.0
        %698 = vmatpush.msra.mxu0 0.0
        %699 = vmatpush.msra.mxu0 0.0
        %700 = vmatpush.msra.mxu0 0.0
        %701 = vmatpush.msra.mxu0 0.0
        %702 = vmatpush.msra.mxu0 0.0
        %703 = vmatpush.msra.mxu0 0.0
        %704 = vmatpush.msra.mxu0 0.0
        %705 = vmatpush.msra.mxu0 0.0
        %706 = vmatpush.msra.mxu0 0.0
        %707 = vmatpush.msra.mxu0 0.0
        %708 = vmatpush.msra.mxu0 %v630
        %709 = vmatpush.msra.mxu0 %v629
        %710 = vmatmul.f32.gmra.mxu0 %v690
        %v711 = vpop.f32.mrf.mxu0
        %v712 = vadd.f32 %v685, %v711
        %713 = vmatmul.f32.gmra.mxu0 %v692
        %v714 = vpop.f32.mrf.mxu0
        %v715 = vadd.f32 %v688, %v714
        %716 = vdwg.mxu0
        %vm717 = vcmask 1045504
        %v718 = vrot.slane %v654, 2
        %v719 = vrot.slane %v655, 2
        %v720 = vsel %vm717, %v718, %v719
        %v721 = vsel %vm662, %v720, 0
        %v723 = vsel %vm662, %v719, 0
        %725 = vmatpush.msra.mxu0 0.0
        %726 = vmatpush.msra.mxu0 0.0
        %727 = vmatpush.msra.mxu0 0.0
        %728 = vmatpush.msra.mxu0 0.0
        %729 = vmatpush.msra.mxu0 0.0
        %730 = vmatpush.msra.mxu0 0.0
        %731 = vmatpush.msra.mxu0 0.0
        %732 = vmatpush.msra.mxu0 0.0
        %733 = vmatpush.msra.mxu0 0.0
        %734 = vmatpush.msra.mxu0 0.0
        %735 = vmatpush.msra.mxu0 0.0
        %736 = vmatpush.msra.mxu0 0.0
        %737 = vmatpush.msra.mxu0 0.0
        %738 = vmatpush.msra.mxu0 0.0
        %739 = vmatpush.msra.mxu0 %v646
        %740 = vmatpush.msra.mxu0 %v645
        %741 = vmatmul.f32.gmra.mxu0 %v721
        %v742 = vpop.f32.mrf.mxu0
        %v743 = vadd.f32 0.0, %v742
        %744 = vmatmul.f32.gmra.mxu0 %v723
        %v745 = vpop.f32.mrf.mxu0
        %v746 = vadd.f32 0.0, %v745
        %747 = vdwg.mxu0
        %v748 = vadd.f32 %v712, %v743
        %v749 = vadd.f32 %v715, %v746
        %s750 = scalar_lea.vmem %s628, 16
        %v751 = vld [vmem:[%s750] sm:$0xff]
        %v752 = vld [vmem:[%s750 + $0x8] sm:$0xff]
        %v754 = vsel %vm662, %v751, 0
        %v757 = vsel %vm662, %v752, 0
        %759 = vmatpush.msra.mxu0 0.0
        %760 = vmatpush.msra.mxu0 0.0
        %761 = vmatpush.msra.mxu0 0.0
        %762 = vmatpush.msra.mxu0 0.0
        %763 = vmatpush.msra.mxu0 0.0
        %764 = vmatpush.msra.mxu0 0.0
        %765 = vmatpush.msra.mxu0 0.0
        %766 = vmatpush.msra.mxu0 0.0
        %767 = vmatpush.msra.mxu0 0.0
        %768 = vmatpush.msra.mxu0 0.0
        %769 = vmatpush.msra.mxu0 0.0
        %770 = vmatpush.msra.mxu0 0.0
        %771 = vmatpush.msra.mxu0 0.0
        %772 = vmatpush.msra.mxu0 0.0
        %773 = vmatpush.msra.mxu0 %v632
        %774 = vmatpush.msra.mxu0 %v631
        %775 = vmatmul.f32.gmra.mxu0 %v754
        %v776 = vpop.f32.mrf.mxu0
        %v777 = vadd.f32 0.0, %v776
        %778 = vmatmul.f32.gmra.mxu0 %v757
        %v779 = vpop.f32.mrf.mxu0
        %v780 = vadd.f32 0.0, %v779
        %781 = vdwg.mxu0
        %v782 = vadd.f32 %v748, %v777
        %v783 = vadd.f32 %v749, %v780
        %v784 = vrot.slane %v751, 1
        %v785 = vrot.slane %v752, 1
        %v786 = vsel %vm658, %v784, %v785
        %v787 = vsel %vm662, %v786, 0
        %v789 = vsel %vm662, %v785, 0
        %791 = vmatpush.msra.mxu0 0.0
        %792 = vmatpush.msra.mxu0 0.0
        %793 = vmatpush.msra.mxu0 0.0
        %794 = vmatpush.msra.mxu0 0.0
        %795 = vmatpush.msra.mxu0 0.0
        %796 = vmatpush.msra.mxu0 0.0
        %797 = vmatpush.msra.mxu0 0.0
        %798 = vmatpush.msra.mxu0 0.0
        %799 = vmatpush.msra.mxu0 0.0
        %800 = vmatpush.msra.mxu0 0.0
        %801 = vmatpush.msra.mxu0 0.0
        %802 = vmatpush.msra.mxu0 0.0
        %803 = vmatpush.msra.mxu0 0.0
        %804 = vmatpush.msra.mxu0 0.0
        %805 = vmatpush.msra.mxu0 %v640
        %806 = vmatpush.msra.mxu0 %v639
        %807 = vmatmul.f32.gmra.mxu0 %v787
        %v808 = vpop.f32.mrf.mxu0
        %v809 = vadd.f32 0.0, %v808
        %810 = vmatmul.f32.gmra.mxu0 %v789
        %v811 = vpop.f32.mrf.mxu0
        %v812 = vadd.f32 0.0, %v811
        %813 = vdwg.mxu0
        %v814 = vadd.f32 %v782, %v809
        %v815 = vadd.f32 %v783, %v812
        %v816 = vrot.slane %v751, 2
        %v817 = vrot.slane %v752, 2
        %v818 = vsel %vm717, %v816, %v817
        %v819 = vsel %vm662, %v818, 0
        %v821 = vsel %vm662, %v817, 0
        %823 = vmatpush.msra.mxu0 0.0
        %824 = vmatpush.msra.mxu0 0.0
        %825 = vmatpush.msra.mxu0 0.0
        %826 = vmatpush.msra.mxu0 0.0
        %827 = vmatpush.msra.mxu0 0.0
        %828 = vmatpush.msra.mxu0 0.0
        %829 = vmatpush.msra.mxu0 0.0
        %830 = vmatpush.msra.mxu0 0.0
        %831 = vmatpush.msra.mxu0 0.0
        %832 = vmatpush.msra.mxu0 0.0
        %833 = vmatpush.msra.mxu0 0.0
        %834 = vmatpush.msra.mxu0 0.0
        %835 = vmatpush.msra.mxu0 0.0
        %836 = vmatpush.msra.mxu0 0.0
        %837 = vmatpush.msra.mxu0 %v648
        %838 = vmatpush.msra.mxu0 %v647
        %839 = vmatmul.f32.gmra.mxu0 %v819
        %v840 = vpop.f32.mrf.mxu0
        %v841 = vadd.f32 0.0, %v840
        %842 = vmatmul.f32.gmra.mxu0 %v821
        %v843 = vpop.f32.mrf.mxu0
        %v844 = vadd.f32 0.0, %v843
        %845 = vdwg.mxu0
        %v846 = vadd.f32 %v814, %v841
        %v847 = vadd.f32 %v815, %v844
        %s848 = scalar_lea.vmem %s628, 32
        %v849 = vld [vmem:[%s848] sm:$0xff]
        %v850 = vld [vmem:[%s848 + $0x8] sm:$0xff]
        %v852 = vsel %vm662, %v849, 0
        %v855 = vsel %vm662, %v850, 0
        %857 = vmatpush.msra.mxu0 0.0
        %858 = vmatpush.msra.mxu0 0.0
        %859 = vmatpush.msra.mxu0 0.0
        %860 = vmatpush.msra.mxu0 0.0
        %861 = vmatpush.msra.mxu0 0.0
        %862 = vmatpush.msra.mxu0 0.0
        %863 = vmatpush.msra.mxu0 0.0
        %864 = vmatpush.msra.mxu0 0.0
        %865 = vmatpush.msra.mxu0 0.0
        %866 = vmatpush.msra.mxu0 0.0
        %867 = vmatpush.msra.mxu0 0.0
        %868 = vmatpush.msra.mxu0 0.0
        %869 = vmatpush.msra.mxu0 0.0
        %870 = vmatpush.msra.mxu0 0.0
        %871 = vmatpush.msra.mxu0 %v634
        %872 = vmatpush.msra.mxu0 %v633
        %873 = vmatmul.f32.gmra.mxu0 %v852
        %v874 = vpop.f32.mrf.mxu0
        %v875 = vadd.f32 0.0, %v874
        %876 = vmatmul.f32.gmra.mxu0 %v855
        %v877 = vpop.f32.mrf.mxu0
        %v878 = vadd.f32 0.0, %v877
        %879 = vdwg.mxu0
        %v880 = vadd.f32 %v846, %v875
        %v881 = vadd.f32 %v847, %v878
        %v882 = vrot.slane %v849, 1
        %v883 = vrot.slane %v850, 1
        %v884 = vsel %vm658, %v882, %v883
        %v885 = vsel %vm662, %v884, 0
        %v887 = vsel %vm662, %v883, 0
        %889 = vmatpush.msra.mxu0 0.0
        %890 = vmatpush.msra.mxu0 0.0
        %891 = vmatpush.msra.mxu0 0.0
        %892 = vmatpush.msra.mxu0 0.0
        %893 = vmatpush.msra.mxu0 0.0
        %894 = vmatpush.msra.mxu0 0.0
        %895 = vmatpush.msra.mxu0 0.0
        %896 = vmatpush.msra.mxu0 0.0
        %897 = vmatpush.msra.mxu0 0.0
        %898 = vmatpush.msra.mxu0 0.0
        %899 = vmatpush.msra.mxu0 0.0
        %900 = vmatpush.msra.mxu0 0.0
        %901 = vmatpush.msra.mxu0 0.0
        %902 = vmatpush.msra.mxu0 0.0
        %903 = vmatpush.msra.mxu0 %v642
        %904 = vmatpush.msra.mxu0 %v641
        %905 = vmatmul.f32.gmra.mxu0 %v885
        %v906 = vpop.f32.mrf.mxu0
        %v907 = vadd.f32 0.0, %v906
        %908 = vmatmul.f32.gmra.mxu0 %v887
        %v909 = vpop.f32.mrf.mxu0
        %v910 = vadd.f32 0.0, %v909
        %911 = vdwg.mxu0
        %v912 = vadd.f32 %v880, %v907
        %v913 = vadd.f32 %v881, %v910
        %v914 = vrot.slane %v849, 2
        %v915 = vrot.slane %v850, 2
        %v916 = vsel %vm717, %v914, %v915
        %v917 = vsel %vm662, %v916, 0
        %v919 = vsel %vm662, %v915, 0
        %921 = vmatpush.msra.mxu0 0.0
        %922 = vmatpush.msra.mxu0 0.0
        %923 = vmatpush.msra.mxu0 0.0
        %924 = vmatpush.msra.mxu0 0.0
        %925 = vmatpush.msra.mxu0 0.0
        %926 = vmatpush.msra.mxu0 0.0
        %927 = vmatpush.msra.mxu0 0.0
        %928 = vmatpush.msra.mxu0 0.0
        %929 = vmatpush.msra.mxu0 0.0
        %930 = vmatpush.msra.mxu0 0.0
        %931 = vmatpush.msra.mxu0 0.0
        %932 = vmatpush.msra.mxu0 0.0
        %933 = vmatpush.msra.mxu0 0.0
        %934 = vmatpush.msra.mxu0 0.0
        %935 = vmatpush.msra.mxu0 %v650
        %936 = vmatpush.msra.mxu0 %v649
        %937 = vmatmul.f32.gmra.mxu0 %v917
        %v938 = vpop.f32.mrf.mxu0
        %v939 = vadd.f32 0.0, %v938
        %940 = vmatmul.f32.gmra.mxu0 %v919
        %v941 = vpop.f32.mrf.mxu0
        %v942 = vadd.f32 0.0, %v941
        %943 = vdwg.mxu0
        %v944 = vadd.f32 %v912, %v939
        %v945 = vadd.f32 %v913, %v942
        %s946 = scalar_lea.vmem %s628, 48
        %v947 = vld [vmem:[%s946] sm:$0xff]
        %v948 = vld [vmem:[%s946 + $0x8] sm:$0xff]
        %v950 = vsel %vm662, %v947, 0
        %v953 = vsel %vm662, %v948, 0
        %955 = vmatpush.msra.mxu0 0.0
        %956 = vmatpush.msra.mxu0 0.0
        %957 = vmatpush.msra.mxu0 0.0
        %958 = vmatpush.msra.mxu0 0.0
        %959 = vmatpush.msra.mxu0 0.0
        %960 = vmatpush.msra.mxu0 0.0
        %961 = vmatpush.msra.mxu0 0.0
        %962 = vmatpush.msra.mxu0 0.0
        %963 = vmatpush.msra.mxu0 0.0
        %964 = vmatpush.msra.mxu0 0.0
        %965 = vmatpush.msra.mxu0 0.0
        %966 = vmatpush.msra.mxu0 0.0
        %967 = vmatpush.msra.mxu0 0.0
        %968 = vmatpush.msra.mxu0 0.0
        %969 = vmatpush.msra.mxu0 %v636
        %970 = vmatpush.msra.mxu0 %v635
        %971 = vmatmul.f32.gmra.mxu0 %v950
        %v972 = vpop.f32.mrf.mxu0
        %v973 = vadd.f32 0.0, %v972
        %974 = vmatmul.f32.gmra.mxu0 %v953
        %v975 = vpop.f32.mrf.mxu0
        %v976 = vadd.f32 0.0, %v975
        %977 = vdwg.mxu0
        %v978 = vadd.f32 %v944, %v973
        %v979 = vadd.f32 %v945, %v976
        %v980 = vrot.slane %v947, 1
        %v981 = vrot.slane %v948, 1
        %v982 = vsel %vm658, %v980, %v981
        %v983 = vsel %vm662, %v982, 0
        %v985 = vsel %vm662, %v981, 0
        %987 = vmatpush.msra.mxu0 0.0
        %988 = vmatpush.msra.mxu0 0.0
        %989 = vmatpush.msra.mxu0 0.0
        %990 = vmatpush.msra.mxu0 0.0
        %991 = vmatpush.msra.mxu0 0.0
        %992 = vmatpush.msra.mxu0 0.0
        %993 = vmatpush.msra.mxu0 0.0
        %994 = vmatpush.msra.mxu0 0.0
        %995 = vmatpush.msra.mxu0 0.0
        %996 = vmatpush.msra.mxu0 0.0
        %997 = vmatpush.msra.mxu0 0.0
        %998 = vmatpush.msra.mxu0 0.0
        %999 = vmatpush.msra.mxu0 0.0
        %1000 = vmatpush.msra.mxu0 0.0
        %1001 = vmatpush.msra.mxu0 %v644
        %1002 = vmatpush.msra.mxu0 %v643
        %1003 = vmatmul.f32.gmra.mxu0 %v983
        %v1004 = vpop.f32.mrf.mxu0
        %v1005 = vadd.f32 0.0, %v1004
        %1006 = vmatmul.f32.gmra.mxu0 %v985
        %v1007 = vpop.f32.mrf.mxu0
        %v1008 = vadd.f32 0.0, %v1007
        %1009 = vdwg.mxu0
        %v1010 = vadd.f32 %v978, %v1005
        %v1011 = vadd.f32 %v979, %v1008
        %v1012 = vrot.slane %v947, 2
        %v1013 = vrot.slane %v948, 2
        %v1014 = vsel %vm717, %v1012, %v1013
        %v1015 = vsel %vm662, %v1014, 0
        %v1017 = vsel %vm662, %v1013, 0
        %1019 = vmatpush.msra.mxu0 0.0
        %1020 = vmatpush.msra.mxu0 0.0
        %1021 = vmatpush.msra.mxu0 0.0
        %1022 = vmatpush.msra.mxu0 0.0
        %1023 = vmatpush.msra.mxu0 0.0
        %1024 = vmatpush.msra.mxu0 0.0
        %1025 = vmatpush.msra.mxu0 0.0
        %1026 = vmatpush.msra.mxu0 0.0
        %1027 = vmatpush.msra.mxu0 0.0
        %1028 = vmatpush.msra.mxu0 0.0
        %1029 = vmatpush.msra.mxu0 0.0
        %1030 = vmatpush.msra.mxu0 0.0
        %1031 = vmatpush.msra.mxu0 0.0
        %1032 = vmatpush.msra.mxu0 0.0
        %1033 = vmatpush.msra.mxu0 %v652
        %1034 = vmatpush.msra.mxu0 %v651
        %1035 = vmatmul.f32.gmra.mxu0 %v1015
        %v1036 = vpop.f32.mrf.mxu0
        %v1037 = vadd.f32 0.0, %v1036
        %1038 = vmatmul.f32.gmra.mxu0 %v1017
        %v1039 = vpop.f32.mrf.mxu0
        %v1040 = vadd.f32 0.0, %v1039
        %1041 = vdwg.mxu0
        %v1042 = vadd.f32 %v1010, %v1037
        %v1043 = vadd.f32 %v1011, %v1040
        %v1045 = vperm.slane %v653, 0
        %v1047 = vadd.f32 %v1042, %v1045
        %v1048 = vadd.f32 %v1043, %v1045
        %vm1049 = vcmp.gt.f32.partialorder %v1047, 0.0
        %vm1050 = vcmp.gt.f32.partialorder %v1048, 0.0
        %v1051 = vmul.f32 %v1047, 0.01
        %v1052 = vmul.f32 %v1048, 0.01
        %v1053 = vsel %vm1049, %v1047, %v1051
        %v1054 = vsel %vm1050, %v1048, %v1052
        %v1055 = vld [vmem:[#allocation7] sm:$0xff]
        %v1056 = vld [vmem:[#allocation7 + $0x8] sm:$0xff]
        %v1057 = vld [vmem:[#allocation7 + $0x10] sm:$0xff]
        %v1058 = vld [vmem:[#allocation7 + $0x18] sm:$0xff]
        %v1059 = vld [vmem:[#allocation7 + $0x20] sm:$0xff]
        %v1060 = vld [vmem:[#allocation7 + $0x28] sm:$0xff]
        %v1061 = vld [vmem:[#allocation7 + $0x30] sm:$0xff]
        %v1062 = vld [vmem:[#allocation7 + $0x38] sm:$0xff]
        %v1063 = vld [vmem:[#allocation7 + $0x40] sm:$0xff]
        %v1064 = vld [vmem:[#allocation7 + $0x48] sm:$0xff]
        %v1065 = vld [vmem:[#allocation7 + $0x50] sm:$0xff]
        %v1066 = vld [vmem:[#allocation7 + $0x58] sm:$0xff]
        %v1067 = vld [vmem:[#allocation7 + $0x60] sm:$0xff]
        %v1068 = vld [vmem:[#allocation7 + $0x68] sm:$0xff]
        %v1069 = vld [vmem:[#allocation7 + $0x70] sm:$0xff]
        %v1070 = vld [vmem:[#allocation7 + $0x78] sm:$0xff]
        %v1071 = vld [vmem:[#allocation8] sm:$0xff]
        %v1072 = vld [vmem:[#allocation8 + $0x8] sm:$0xff]
        %v1073 = vld [vmem:[#allocation8 + $0x10] sm:$0xff]
        %v1074 = vld [vmem:[#allocation8 + $0x18] sm:$0xff]
        %v1075 = vld [vmem:[#allocation8 + $0x20] sm:$0xff]
        %v1076 = vld [vmem:[#allocation8 + $0x28] sm:$0xff]
        %v1077 = vld [vmem:[#allocation8 + $0x30] sm:$0xff]
        %v1078 = vld [vmem:[#allocation8 + $0x38] sm:$0xff]
        %v1079 = vld [vmem:[#allocation8 + $0x40] sm:$0xff]
        %v1080 = vld [vmem:[#allocation8 + $0x48] sm:$0xff]
        %v1081 = vld [vmem:[#allocation8 + $0x50] sm:$0xff]
        %v1082 = vld [vmem:[#allocation8 + $0x58] sm:$0xff]
        %v1083 = vld [vmem:[#allocation8 + $0x60] sm:$0xff]
        %v1084 = vld [vmem:[#allocation8 + $0x68] sm:$0xff]
        %v1085 = vld [vmem:[#allocation8 + $0x70] sm:$0xff]
        %v1086 = vld [vmem:[#allocation8 + $0x78] sm:$0xff]
        %v1087 = vld [vmem:[#allocation10] sm:$0xff]
        %v1088 = vld [vmem:[#allocation10 + $0x8] sm:$0xff]
        %v1089 = vld [vmem:[#allocation10 + $0x10] sm:$0xff]
        %v1090 = vld [vmem:[#allocation10 + $0x18] sm:$0xff]
        %v1091 = vld [vmem:[#allocation10 + $0x20] sm:$0xff]
        %v1092 = vld [vmem:[#allocation10 + $0x28] sm:$0xff]
        %v1093 = vld [vmem:[#allocation10 + $0x30] sm:$0xff]
        %v1094 = vld [vmem:[#allocation10 + $0x38] sm:$0xff]
        %v1095 = vld [vmem:[#allocation10 + $0x40] sm:$0xff]
        %v1096 = vld [vmem:[#allocation10 + $0x48] sm:$0xff]
        %v1097 = vld [vmem:[#allocation10 + $0x50] sm:$0xff]
        %v1098 = vld [vmem:[#allocation10 + $0x58] sm:$0xff]
        %v1099 = vld [vmem:[#allocation10 + $0x60] sm:$0xff]
        %v1100 = vld [vmem:[#allocation10 + $0x68] sm:$0xff]
        %v1101 = vld [vmem:[#allocation10 + $0x70] sm:$0xff]
        %v1102 = vld [vmem:[#allocation10 + $0x78] sm:$0xff]
        %v1103 = vld [vmem:[%s8] sm:$0x1]
        %v1106 = vrot.slane %v1053, 1
        %v1107 = vrot.slane %v1054, 1
        %v1108 = vsel %vm658, %v1106, %v1107
        %1111 = vmatpush.msra.mxu0 %v1086
        %1112 = vmatpush.msra.mxu0 %v1085
        %1113 = vmatpush.msra.mxu0 %v1084
        %1114 = vmatpush.msra.mxu0 %v1083
        %1115 = vmatpush.msra.mxu0 %v1082
        %1116 = vmatpush.msra.mxu0 %v1081
        %1117 = vmatpush.msra.mxu0 %v1080
        %1118 = vmatpush.msra.mxu0 %v1079
        %1119 = vmatpush.msra.mxu0 %v1078
        %1120 = vmatpush.msra.mxu0 %v1077
        %1121 = vmatpush.msra.mxu0 %v1076
        %1122 = vmatpush.msra.mxu0 %v1075
        %1123 = vmatpush.msra.mxu0 %v1074
        %1124 = vmatpush.msra.mxu0 %v1073
        %1125 = vmatpush.msra.mxu0 %v1072
        %1126 = vmatpush.msra.mxu0 %v1071
        %1127 = vmatmul.f32.gmra.mxu0 %v1108
        %v1128 = vpop.f32.mrf.mxu0
        %v1129 = vadd.f32 0.0, %v1128
        %1130 = vmatmul.f32.gmra.mxu0 %v1107
        %v1131 = vpop.f32.mrf.mxu0
        %v1132 = vadd.f32 0.0, %v1131
        %1133 = vdwg.mxu0
        %1134 = vmatpush.msra.mxu0 %v1070
        %1135 = vmatpush.msra.mxu0 %v1069
        %1136 = vmatpush.msra.mxu0 %v1068
        %1137 = vmatpush.msra.mxu0 %v1067
        %1138 = vmatpush.msra.mxu0 %v1066
        %1139 = vmatpush.msra.mxu0 %v1065
        %1140 = vmatpush.msra.mxu0 %v1064
        %1141 = vmatpush.msra.mxu0 %v1063
        %1142 = vmatpush.msra.mxu0 %v1062
        %1143 = vmatpush.msra.mxu0 %v1061
        %1144 = vmatpush.msra.mxu0 %v1060
        %1145 = vmatpush.msra.mxu0 %v1059
        %1146 = vmatpush.msra.mxu0 %v1058
        %1147 = vmatpush.msra.mxu0 %v1057
        %1148 = vmatpush.msra.mxu0 %v1056
        %1149 = vmatpush.msra.mxu0 %v1055
        %1150 = vmatmul.f32.gmra.mxu0 %v1053
        %v1151 = vpop.f32.mrf.mxu0
        %v1152 = vadd.f32 %v1129, %v1151
        %1153 = vmatmul.f32.gmra.mxu0 %v1054
        %v1154 = vpop.f32.mrf.mxu0
        %v1155 = vadd.f32 %v1132, %v1154
        %1156 = vdwg.mxu0
        %v1157 = vrot.slane %v1053, 2
        %v1158 = vrot.slane %v1054, 2
        %v1159 = vsel %vm717, %v1157, %v1158
        %1162 = vmatpush.msra.mxu0 %v1102
        %1163 = vmatpush.msra.mxu0 %v1101
        %1164 = vmatpush.msra.mxu0 %v1100
        %1165 = vmatpush.msra.mxu0 %v1099
        %1166 = vmatpush.msra.mxu0 %v1098
        %1167 = vmatpush.msra.mxu0 %v1097
        %1168 = vmatpush.msra.mxu0 %v1096
        %1169 = vmatpush.msra.mxu0 %v1095
        %1170 = vmatpush.msra.mxu0 %v1094
        %1171 = vmatpush.msra.mxu0 %v1093
        %1172 = vmatpush.msra.mxu0 %v1092
        %1173 = vmatpush.msra.mxu0 %v1091
        %1174 = vmatpush.msra.mxu0 %v1090
        %1175 = vmatpush.msra.mxu0 %v1089
        %1176 = vmatpush.msra.mxu0 %v1088
        %1177 = vmatpush.msra.mxu0 %v1087
        %1178 = vmatmul.f32.gmra.mxu0 %v1159
        %v1179 = vpop.f32.mrf.mxu0
        %v1180 = vadd.f32 0.0, %v1179
        %1181 = vmatmul.f32.gmra.mxu0 %v1158
        %v1182 = vpop.f32.mrf.mxu0
        %v1183 = vadd.f32 0.0, %v1182
        %1184 = vdwg.mxu0
        %v1185 = vadd.f32 %v1152, %v1180
        %v1186 = vadd.f32 %v1155, %v1183
        %v1188 = vperm.slane %v1103, 0
        %v1190 = vadd.f32 %v1185, %v1188
        %v1191 = vadd.f32 %v1186, %v1188
        %vm1192 = vcmp.gt.f32.partialorder %v1190, 0.0
        %vm1193 = vcmp.gt.f32.partialorder %v1191, 0.0
        %v1194 = vmul.f32 %v1190, 0.01
        %v1195 = vmul.f32 %v1191, 0.01
        %v1196 = vsel %vm1192, %v1190, %v1194
        %v1197 = vsel %vm1193, %v1191, %v1195
        %v1198 = vld [vmem:[%s9] sm:$0x1]
        %v1199 = vld [vmem:[%s10] sm:$0xff]
        %v1200 = vld [vmem:[%s10 + $0x8] sm:$0xff]
        %v1201 = vld [vmem:[%s10 + $0x10] sm:$0xff]
        %v1202 = vld [vmem:[%s10 + $0x18] sm:$0xff]
        %v1203 = vld [vmem:[%s10 + $0x20] sm:$0xff]
        %v1204 = vld [vmem:[%s10 + $0x28] sm:$0xff]
        %v1205 = vld [vmem:[%s10 + $0x30] sm:$0xff]
        %v1206 = vld [vmem:[%s10 + $0x38] sm:$0xff]
        %v1207 = vld [vmem:[%s10 + $0x40] sm:$0xff]
        %v1208 = vld [vmem:[%s10 + $0x48] sm:$0xff]
        %v1209 = vld [vmem:[%s10 + $0x50] sm:$0xff]
        %v1210 = vld [vmem:[%s10 + $0x58] sm:$0xff]
        %v1211 = vld [vmem:[%s10 + $0x60] sm:$0xff]
        %v1212 = vld [vmem:[%s10 + $0x68] sm:$0xff]
        %v1213 = vld [vmem:[%s10 + $0x70] sm:$0xff]
        %v1214 = vld [vmem:[%s10 + $0x78] sm:$0xff]
        %vm1215 = vcmask 97280
        %v1217 = vsel %vm1215, %v1198, 0
        %vm1219 = vcmask 1043456
        %v1221 = vsel %vm1219, %v1197, 0
        %1223 = vmatpush.msra.mxu0 0.0
        %1224 = vmatpush.msra.mxu0 0.0
        %1225 = vmatpush.msra.mxu0 0.0
        %1226 = vmatpush.msra.mxu0 0.0
        %1227 = vmatpush.msra.mxu0 0.0
        %1228 = vmatpush.msra.mxu0 0.0
        %1229 = vmatpush.msra.mxu0 0.0
        %1230 = vmatpush.msra.mxu0 0.0
        %1231 = vmatpush.msra.mxu0 0.0
        %1232 = vmatpush.msra.mxu0 0.0
        %1233 = vmatpush.msra.mxu0 0.0
        %1234 = vmatpush.msra.mxu0 0.0
        %1235 = vmatpush.msra.mxu0 0.0
        %1236 = vmatpush.msra.mxu0 0.0
        %1237 = vmatpush.msra.mxu0 %v1221
        %1238 = vmatpush.msra.mxu0 %v1196
        %1239 = vmatmul.f32.gmra.mxu0 %v1217
        %v1240 = vpop.f32.mrf.mxu0
        %v1241 = vadd.f32 0.0, %v1240
        %1242 = vdwg.mxu0
        %1243 = vmatpush.msra.mxu0 %v1214
        %1244 = vmatpush.msra.mxu0 %v1213
        %1245 = vmatpush.msra.mxu0 %v1212
        %1246 = vmatpush.msra.mxu0 %v1211
        %1247 = vmatpush.msra.mxu0 %v1210
        %1248 = vmatpush.msra.mxu0 %v1209
        %1249 = vmatpush.msra.mxu0 %v1208
        %1250 = vmatpush.msra.mxu0 %v1207
        %1251 = vmatpush.msra.mxu0 %v1206
        %1252 = vmatpush.msra.mxu0 %v1205
        %1253 = vmatpush.msra.mxu0 %v1204
        %1254 = vmatpush.msra.mxu0 %v1203
        %1255 = vmatpush.msra.mxu0 %v1202
        %1256 = vmatpush.msra.mxu0 %v1201
        %1257 = vmatpush.msra.mxu0 %v1200
        %1258 = vmatpush.msra.mxu0 %v1199
        %1259 = vmatmul.f32.gmra.mxu0 %v1241
        %v1260 = vpop.f32.mrf.mxu0
        %v1261 = vadd.f32 0.0, %v1260
        %1262 = vdwg.mxu0
        %v1263 = vld [vmem:[%s11] sm:$0xff]
        %v1264 = vld [vmem:[%s12] sm:$0x1]
        %vm1265 = vcmask 64512
        %v1267 = vsel %vm1265, %v1261, 0
        %1269 = vmatpush.msra.mxu0 0.0
        %1270 = vmatpush.msra.mxu0 0.0
        %1271 = vmatpush.msra.mxu0 0.0
        %1272 = vmatpush.msra.mxu0 0.0
        %1273 = vmatpush.msra.mxu0 0.0
        %1274 = vmatpush.msra.mxu0 0.0
        %1275 = vmatpush.msra.mxu0 0.0
        %1276 = vmatpush.msra.mxu0 0.0
        %1277 = vmatpush.msra.mxu0 0.0
        %1278 = vmatpush.msra.mxu0 0.0
        %1279 = vmatpush.msra.mxu0 0.0
        %1280 = vmatpush.msra.mxu0 0.0
        %1281 = vmatpush.msra.mxu0 0.0
        %1282 = vmatpush.msra.mxu0 0.0
        %1283 = vmatpush.msra.mxu0 0.0
        %1284 = vmatpush.msra.mxu0 %v1263
        %1285 = vmatmul.f32.gmra.mxu0 %v1267
        %v1286 = vpop.f32.mrf.mxu0
        %v1287 = vadd.f32 %v1264, %v1286
        %1288 = vdwg.mxu0
        %vm1289 = vcmp.gt.f32.partialorder %v1287, 0.0
        %v1290 = vmul.f32 %v1287, 0.01
        %v1291 = vsel %vm1289, %v1287, %v1290
        %v1292 = vld [vmem:[%s13] sm:$0xff]
        %v1293 = vld [vmem:[%s13 + $0x8] sm:$0xff]
        %v1294 = vld [vmem:[%s13 + $0x10] sm:$0xff]
        %v1295 = vld [vmem:[%s13 + $0x18] sm:$0xff]
        %v1296 = vld [vmem:[%s14] sm:$0x1]
        %vm1297 = vcmask 261120
        %v1299 = vsel %vm1297, %v1291, 0
        %1301 = vmatpush.msra.mxu0 0.0
        %1302 = vmatpush.msra.mxu0 0.0
        %1303 = vmatpush.msra.mxu0 0.0
        %1304 = vmatpush.msra.mxu0 0.0
        %1305 = vmatpush.msra.mxu0 0.0
        %1306 = vmatpush.msra.mxu0 0.0
        %1307 = vmatpush.msra.mxu0 0.0
        %1308 = vmatpush.msra.mxu0 0.0
        %1309 = vmatpush.msra.mxu0 0.0
        %1310 = vmatpush.msra.mxu0 0.0
        %1311 = vmatpush.msra.mxu0 0.0
        %1312 = vmatpush.msra.mxu0 0.0
        %1313 = vmatpush.msra.mxu0 %v1295
        %1314 = vmatpush.msra.mxu0 %v1294
        %1315 = vmatpush.msra.mxu0 %v1293
        %1316 = vmatpush.msra.mxu0 %v1292
        %1317 = vmatmul.f32.gmra.mxu0 %v1299
        %v1318 = vpop.f32.mrf.mxu0
        %v1319 = vadd.f32 %v1296, %v1318
        %1320 = vdwg.mxu0
        %vm1321 = vcmp.gt.f32.partialorder %v1319, 0.0
        %v1322 = vmul.f32 %v1319, 0.01
        %v1323 = vsel %vm1321, %v1319, %v1322
        %v1324 = vld [vmem:[%s15] sm:$0xff]
        %v1325 = vld [vmem:[%s15 + $0x8] sm:$0xff]
        %v1326 = vld [vmem:[%s16] sm:$0x1]
        %v1328 = vsel %vm662, %v1323, 0
        %1330 = vmatpush.msra.mxu0 0.0
        %1331 = vmatpush.msra.mxu0 0.0
        %1332 = vmatpush.msra.mxu0 0.0
        %1333 = vmatpush.msra.mxu0 0.0
        %1334 = vmatpush.msra.mxu0 0.0
        %1335 = vmatpush.msra.mxu0 0.0
        %1336 = vmatpush.msra.mxu0 0.0
        %1337 = vmatpush.msra.mxu0 0.0
        %1338 = vmatpush.msra.mxu0 0.0
        %1339 = vmatpush.msra.mxu0 0.0
        %1340 = vmatpush.msra.mxu0 0.0
        %1341 = vmatpush.msra.mxu0 0.0
        %1342 = vmatpush.msra.mxu0 0.0
        %1343 = vmatpush.msra.mxu0 0.0
        %1344 = vmatpush.msra.mxu0 %v1325
        %1345 = vmatpush.msra.mxu0 %v1324
        %1346 = vmatmul.f32.gmra.mxu0 %v1328
        %v1347 = vpop.f32.mrf.mxu0
        %v1348 = vadd.f32 %v1326, %v1347
        %1349 = vdwg.mxu0
        %vm1350 = vcmask 8192
        %1351 = vst.msk [vmem:[%s623] sm:$0x1] %vm1350, %v1348
        %s1352 = sand.u32 %s404, 1
        %s1353 = scalar_lea.sflag [#allocation4], %s1352
        %s1354 = sand.u32 %s404, 1
        %s1355 = scalar_lea.vmem [#allocation11], %s1354
        // Predicated region
        $region109: #{deepsearch_forward.1} parent=87 // pred_check
          %p1356 = pneg %p414
        $region110: #{deepsearch_forward.1} parent=87 // pred_check_branch
          %1358 = sbr.rel (%p1356) target = $region112
        $region111: #{deepsearch_forward.1} parent=87 // pred_region
          %1360 = vsyncadd %s1353, 0
          %s1361 = scalar_lea.hbm %s17, %s34
          %s1363 = sshll.u32 %s1355, 4
          %s1364 = int_to_ptr.vmem [resolvable:$true] %s1363
          %s1365 = sshll.u32 %s1361, 4
          %s1366 = int_to_ptr.hbm [resolvable:$true] %s1365
          %1368 = dma.vmem_to_hbm [thread:$0]  %s1364, 16, %s1366, %s1353
        $region112: #{deepsearch_forward.1} parent=87 // pred_fallthru
          _
      $region88: #{deepsearch_forward.1} parent=5 // pred_fallthru
        _
      %p1369 = scmp.le.s32.totalorder 2, %s29
      // Predicated region
      $region113: #{deepsearch_forward.1} parent=5 // pred_check
        %p1370 = pneg %p1369
      $region114: #{deepsearch_forward.1} parent=5 // pred_check_branch
        %1372 = sbr.rel (%p1370) target = $region116
      $region115: #{deepsearch_forward.1} parent=5 // pred_region
        %s1373 = ssub.s32 %s29, 2
        // Predicated region
        $region117: #{deepsearch_forward.1} parent=115 // pred_check
          %p1374 = pneg %p420
        $region118: #{deepsearch_forward.1} parent=115 // pred_check_branch
          %1376 = sbr.rel (%p1374) target = $region120
        $region119: #{deepsearch_forward.1} parent=115 // pred_region
          %s1377 = sand.u32 %s405, 1
          %s1378 = scalar_lea.sflag [#allocation4], %s1377
          %s1379 = sand.u32 %s405, 1
          %s1380 = scalar_lea.vmem [#allocation11], %s1379
          %1382 = dma.done %s1378, 16
        $region120: #{deepsearch_forward.1} parent=115 // pred_fallthru
          _
      $region116: #{deepsearch_forward.1} parent=5 // pred_fallthru
        _
    $region6: #{deepsearch_forward.1} parent=1 // loop_footer
      %s33 = sadd.s32 1, %s29
    $region7: #{deepsearch_forward.1} parent=1 // loop_footer_branch
      %28 = sbr.rel target = $region3
    $region8: #{deepsearch_forward.1} parent=1 // loop_exit
      _
    %1383 = vsyncpa [#allocation3], 1
    %s1384 = scalar_lea.sflag [#allocation3], 1
    %1385 = vsyncpa %s1384, 1
    %1386 = vsyncpa [#allocation6], 1
    %1387 = vsyncpa [#allocation9], 1
    %1388 = vsyncpa [#allocation4], 1
    %s1389 = scalar_lea.sflag [#allocation4], 1
    %1390 = vsyncpa %s1389, 1

</llo_original>
